<compile_context>
chip_gen: v5e
topology: v5e:2x2
jax: 0.10.0
libtpu: 0.0.40
codegen_flags: <defaults>
</compile_context>

<pallas_src>
import functools

import jax
import jax.numpy as jnp
from jax import lax
from jax.experimental import pallas as pl
from jax.experimental.pallas import tpu as pltpu

_VMEM_LIMIT_BYTES = 32 * 1024 * 1024   # conservative; fits v5e/v6e/v7x scoped VMEM
_TILE_M = 256                          # row tile for matmuls (multiple of 16)


def _round_up(x, m):
    return (x + m - 1) // m * m


# ---------------------------------------------------------------------------
# Pallas kernel: fused  out = relu?(x @ w + b)   (bf16 in, f32 accumulate)
# ---------------------------------------------------------------------------
def _mm_bias_kernel(apply_relu, x_ref, w_ref, b_ref, o_ref):
    acc = jnp.dot(x_ref[...], w_ref[...], preferred_element_type=jnp.float32)
    acc = acc + b_ref[...]                      # (1, N) f32 bias, broadcasts
    if apply_relu:
        acc = jnp.maximum(acc, 0.0)
    o_ref[...] = acc.astype(o_ref.dtype)


def linear_pallas(x, w, b, *, relu, out_dtype=jnp.bfloat16, tile_m=_TILE_M):
    """x: (M, K) bf16, w: (K, N) bf16, b: (N,) f32 -> (M, N) out_dtype."""
    M, K = x.shape
    Kw, N = w.shape
    assert K == Kw
    tile_m = min(tile_m, _round_up(M, 16))
    Mp = _round_up(M, tile_m)
    if Mp != M:
        x = jnp.pad(x, ((0, Mp - M), (0, 0)))
    out = pl.pallas_call(
        functools.partial(_mm_bias_kernel, relu),
        out_shape=jax.ShapeDtypeStruct((Mp, N), out_dtype),
        grid=(Mp // tile_m,),
        in_specs=[
            pl.BlockSpec((tile_m, K), lambda i: (i, 0)),   # row tile of x
            pl.BlockSpec((K, N), lambda i: (0, 0)),        # whole weight
            pl.BlockSpec((1, N), lambda i: (0, 0)),        # bias
        ],
        out_specs=pl.BlockSpec((tile_m, N), lambda i: (i, 0)),
        compiler_params=pltpu.CompilerParams(
            dimension_semantics=("parallel",),
            vmem_limit_bytes=_VMEM_LIMIT_BYTES,
        ),
    )(x, w, b.reshape(1, N).astype(jnp.float32))
    return out[:M] if Mp != M else out


# ---------------------------------------------------------------------------
# Pallas kernel: fused MLP head  q = relu(x @ w1 + b1) @ w2 + b2
# ---------------------------------------------------------------------------
def _mlp_head_kernel(x_ref, w1_ref, b1_ref, w2_ref, b2_ref, o_ref):
    h = jnp.dot(x_ref[...], w1_ref[...], preferred_element_type=jnp.float32)
    h = jnp.maximum(h + b1_ref[...], 0.0)
    q = jnp.dot(h.astype(w2_ref.dtype), w2_ref[...],
                preferred_element_type=jnp.float32)
    o_ref[...] = (q + b2_ref[...]).astype(o_ref.dtype)


def mlp_head_pallas(x, w1, b1, w2, b2, *, tile_m=_TILE_M):
    """x: (B, K) bf16, w1: (K, 512) bf16, w2: (512, A) bf16 -> (B, A) f32."""
    M, K = x.shape
    _, Hd = w1.shape
    _, A = w2.shape
    tile_m = min(tile_m, _round_up(M, 16))
    Mp = _round_up(M, tile_m)
    if Mp != M:
        x = jnp.pad(x, ((0, Mp - M), (0, 0)))
    out = pl.pallas_call(
        _mlp_head_kernel,
        out_shape=jax.ShapeDtypeStruct((Mp, A), jnp.float32),
        grid=(Mp // tile_m,),
        in_specs=[
            pl.BlockSpec((tile_m, K), lambda i: (i, 0)),
            pl.BlockSpec((K, Hd), lambda i: (0, 0)),
            pl.BlockSpec((1, Hd), lambda i: (0, 0)),
            pl.BlockSpec((Hd, A), lambda i: (0, 0)),
            pl.BlockSpec((1, A), lambda i: (0, 0)),
        ],
        out_specs=pl.BlockSpec((tile_m, A), lambda i: (i, 0)),
        compiler_params=pltpu.CompilerParams(
            dimension_semantics=("parallel",),
            vmem_limit_bytes=_VMEM_LIMIT_BYTES,
        ),
    )(x, w1, b1.reshape(1, Hd).astype(jnp.float32),
      w2, b2.reshape(1, A).astype(jnp.float32))
    return out[:M] if Mp != M else out


# ---------------------------------------------------------------------------
# im2col (NHWC, pure slicing/reshape) + conv wrapper (NHWC -> NHWC, bf16)
# ---------------------------------------------------------------------------
def _im2col_nhwc(x, kh, kw, s):
    """x: (N, H, W, C) -> (N*Ho*Wo, kh*kw*C), columns ordered (kh, kw, C)."""
    N, H, W, C = x.shape
    Ho = (H - kh) // s + 1
    Wo = (W - kw) // s + 1
    # TODO(synk): fuse patch extraction into the matmul kernel via manual DMA
    # (memory_space=pl.ANY + make_async_copy) to avoid the kh*kw HBM expansion.
    slabs = []
    for i in range(kh):
        for j in range(kw):
            slabs.append(x[:, i:i + s * Ho:s, j:j + s * Wo:s, :])
    patches = jnp.stack(slabs, axis=3)                 # (N, Ho, Wo, kh*kw, C)
    return patches.reshape(N * Ho * Wo, kh * kw * C), Ho, Wo


def conv2d_pallas(x_nhwc, w_mat, b, *, stride, kh, kw, relu=True):
    """Valid-padding Conv2d (PyTorch semantics) via im2col + Pallas matmul."""
    N = x_nhwc.shape[0]
    O = w_mat.shape[1]
    cols, Ho, Wo = _im2col_nhwc(x_nhwc, kh, kw, stride)
    y = linear_pallas(cols, w_mat, b, relu=relu, out_dtype=jnp.bfloat16)
    return y.reshape(N, Ho, Wo, O)                     # stays NHWC


# ---------------------------------------------------------------------------
# Parameters: PyTorch layout at init, one-time repack for the kernels
# ---------------------------------------------------------------------------
def init_dqn_params(key, c, h, w, num_actions):
    def _conv_out(s, k, st):
        return (s - k) // st + 1

    h1, w1 = _conv_out(h, 8, 4), _conv_out(w, 8, 4)
    h2, w2 = _conv_out(h1, 4, 2), _conv_out(w1, 4, 2)
    h3, w3 = _conv_out(h2, 3, 1), _conv_out(w2, 3, 1)
    flat_dim = 64 * h3 * w3

    keys = jax.random.split(key, 10)

    def _w(k, shape, fan_in):
        return (jax.random.normal(k, shape, jnp.float32) /
                jnp.sqrt(fan_in)).astype(jnp.float32)

    params = {
        "w1": _w(keys[0], (32, c, 8, 8), c * 64),
        "b1": _w(keys[1], (32,), c * 64),
        "w2": _w(keys[2], (64, 32, 4, 4), 32 * 16),
        "b2": _w(keys[3], (64,), 32 * 16),
        "w3": _w(keys[4], (64, 64, 3, 3), 64 * 9),
        "b3": _w(keys[5], (64,), 64 * 9),
        "fc1_w": _w(keys[6], (512, flat_dim), flat_dim),
        "fc1_b": _w(keys[7], (512,), flat_dim),
        "fc2_w": _w(keys[8], (num_actions, 512), 512),
        "fc2_b": _w(keys[9], (num_actions,), 512),
    }
    return params, (h3, w3)


def prepare_params(params, h3, w3):
    """One-time repack: no runtime transposes inside the forward pass."""
    def conv_mat(w_oihw):
        O, Ci, kh, kw = w_oihw.shape
        # (kh, kw, Ci, O) rows match the (kh, kw, C) im2col column ordering.
        return (jnp.transpose(w_oihw, (2, 3, 1, 0))
                   .reshape(kh * kw * Ci, O).astype(jnp.bfloat16))

    c3 = params["w3"].shape[0]                     # conv3 output channels (64)
    # Fold PyTorch's channel-major Flatten (C,H,W) into fc1's columns so the
    # forward can flatten the NHWC conv output directly.
    fc1 = params["fc1_w"].reshape(512, c3, h3, w3)
    fc1 = jnp.transpose(fc1, (2, 3, 1, 0)).reshape(h3 * w3 * c3, 512)

    return {
        "w1": conv_mat(params["w1"]), "b1": params["b1"].astype(jnp.float32),
        "w2": conv_mat(params["w2"]), "b2": params["b2"].astype(jnp.float32),
        "w3": conv_mat(params["w3"]), "b3": params["b3"].astype(jnp.float32),
        "fc1_w": fc1.astype(jnp.bfloat16),
        "fc1_b": params["fc1_b"].astype(jnp.float32),
        "fc2_w": params["fc2_w"].T.astype(jnp.bfloat16),   # (512, A)
        "fc2_b": params["fc2_b"].astype(jnp.float32),
    }


# ---------------------------------------------------------------------------
# Forward pass (mirrors DQN.forward: obs NCHW f32 -> Q-values)
# ---------------------------------------------------------------------------
@jax.jit
def dqn_forward(prep, obs):
    x = obs.astype(jnp.bfloat16).transpose(0, 2, 3, 1)   # NCHW -> NHWC, once
    x = conv2d_pallas(x, prep["w1"], prep["b1"], stride=4, kh=8, kw=8)
    x = conv2d_pallas(x, prep["w2"], prep["b2"], stride=2, kh=4, kw=4)
    x = conv2d_pallas(x, prep["w3"], prep["b3"], stride=1, kh=3, kw=3)
    flat = x.reshape(x.shape[0], -1)     # NHWC flatten (fc1 cols pre-permuted)
    return mlp_head_pallas(flat, prep["fc1_w"], prep["fc1_b"],
                           prep["fc2_w"], prep["fc2_b"])


# ---------------------------------------------------------------------------
# Pure-JAX reference (same bf16-input / f32-accumulate numerics) for checking
# ---------------------------------------------------------------------------
def dqn_forward_ref(params, obs):
    bf16, f32 = jnp.bfloat16, jnp.float32

    def conv(x, w, b, s):
        y = lax.conv_general_dilated(
            x.astype(bf16), w.astype(bf16), (s, s), "VALID",
            dimension_numbers=("NCHW", "OIHW", "NCHW"),
            preferred_element_type=f32)
        return jnp.maximum(y + b[None, :, None, None], 0.0).astype(bf16)

    x = obs.astype(bf16)
    x = conv(x, params["w1"], params["b1"], 4)
    x = conv(x, params["w2"], params["b2"], 2)
    x = conv(x, params["w3"], params["b3"], 1)
    flat = x.reshape(x.shape[0], -1)                   # channel-major flatten
    h = jnp.maximum(
        jnp.dot(flat, params["fc1_w"].T.astype(bf16), preferred_element_type=f32)
        + params["fc1_b"], 0.0)
    return (jnp.dot(h.astype(bf16), params["fc2_w"].T.astype(bf16),
                    preferred_element_type=f32) + params["fc2_b"])


if __name__ == "__main__":
    # Smallest spatial size the 3-conv stack admits: 36x36, 4 frames, batch 2.
    B, C, H, W = 2, 4, 36, 36
    NUM_ACTIONS = 6

    params, (h3, w3) = init_dqn_params(jax.random.PRNGKey(0), C, H, W, NUM_ACTIONS)
    prep = prepare_params(params, h3, w3)
    obs = jax.random.normal(jax.random.PRNGKey(0), (B, C, H, W), jnp.float32)

    q = jax.block_until_ready(dqn_forward(prep, obs))
    q_ref = dqn_forward_ref(params, obs)

    assert q.shape == (B, NUM_ACTIONS), q.shape
    assert jnp.allclose(q, q_ref, rtol=1e-2, atol=1e-2), (
        float(jnp.max(jnp.abs(q - q_ref)))
    )

    print("KERNEL_OK")
</pallas_src>

<mosaic_0001>
module attributes {stable_mosaic.version = 11 : i64} {
  func.func @_mm_bias_kernel(%arg0: i32, %arg1: memref<128x256xbf16, #tpu.memory_space<vmem>>, %arg2: memref<256x32xbf16, #tpu.memory_space<vmem>>, %arg3: memref<1x32xf32, #tpu.memory_space<vmem>>, %arg4: memref<128x32xbf16, #tpu.memory_space<vmem>>) attributes {dimension_semantics = [#tpu.dimension_semantics<parallel>], iteration_bounds = array<i64: 1>, scalar_prefetch = 0 : i64, scratch_operands = 0 : i64, tpu.core_type = #tpu.core_type<tc>, window_params = [{transform_indices = @transform_0, window_bounds = array<i64: 128, 256>}, {pipeline_mode = #tpu.pipeline_mode<synchronous>, transform_indices = @transform_1, window_bounds = array<i64: 256, 32>}, {pipeline_mode = #tpu.pipeline_mode<synchronous>, transform_indices = @transform_2, window_bounds = array<i64: 1, 32>}, {transform_indices = @transform_3, window_bounds = array<i64: 128, 32>}]} {
    %c0 = arith.constant 0 : index
    %c0_0 = arith.constant 0 : index
    %0 = vector.load %arg1[%c0, %c0_0] : memref<128x256xbf16, #tpu.memory_space<vmem>>, vector<128x256xbf16>
    %c0_1 = arith.constant 0 : index
    %c0_2 = arith.constant 0 : index
    %1 = vector.load %arg2[%c0_1, %c0_2] : memref<256x32xbf16, #tpu.memory_space<vmem>>, vector<256x32xbf16>
    %cst = arith.constant dense<0.000000e+00> : vector<128x32xf32>
    %2 = tpu.matmul %0, %1, %cst {dimension_numbers = #tpu.dot_dimension_numbers<[1], [0], [0], [1], [0, 0, 1, 1], [], []>} : vector<128x256xbf16>, vector<256x32xbf16>, vector<128x32xf32> -> vector<128x32xf32>
    %c0_3 = arith.constant 0 : index
    %c0_4 = arith.constant 0 : index
    %3 = vector.load %arg3[%c0_3, %c0_4] : memref<1x32xf32, #tpu.memory_space<vmem>>, vector<1x32xf32>
    %4 = vector.broadcast %3 : vector<1x32xf32> to vector<128x32xf32>
    %5 = arith.addf %2, %4 : vector<128x32xf32>
    %cst_5 = arith.constant 0.000000e+00 : f32
    %6 = vector.broadcast %cst_5 : f32 to vector<128x32xf32>
    %7 = arith.maximumf %5, %6 : vector<128x32xf32>
    %8 = arith.truncf %7 : vector<128x32xf32> to vector<128x32xbf16>
    %c0_6 = arith.constant 0 : index
    %c0_7 = arith.constant 0 : index
    %9 = vector.load %arg4[%c0_6, %c0_7] : memref<128x32xbf16, #tpu.memory_space<vmem>>, vector<128x32xbf16>
    tpu.vector_store %arg4[%c0_6, %c0_7], %8 {strides = array<i32>} : memref<128x32xbf16, #tpu.memory_space<vmem>>, vector<128x32xbf16>,
    return
  }
  func.func @transform_0(%arg0: i32) -> (i32, i32) {
    %c0_i32 = arith.constant 0 : i32
    %c0_i32_0 = arith.constant 0 : i32
    return %arg0, %c0_i32 : i32, i32
  }
  func.func @transform_1(%arg0: i32) -> (i32, i32) {
    %c0_i32 = arith.constant 0 : i32
    %c0_i32_0 = arith.constant 0 : i32
    %c0_i32_1 = arith.constant 0 : i32
    return %c0_i32, %c0_i32_0 : i32, i32
  }
  func.func @transform_2(%arg0: i32) -> (i32, i32) {
    %c0_i32 = arith.constant 0 : i32
    %c0_i32_0 = arith.constant 0 : i32
    %c0_i32_1 = arith.constant 0 : i32
    return %c0_i32, %c0_i32_0 : i32, i32
  }
  func.func @transform_3(%arg0: i32) -> (i32, i32) {
    %c0_i32 = arith.constant 0 : i32
    %c0_i32_0 = arith.constant 0 : i32
    return %arg0, %c0_i32 : i32, i32
  }
}

module attributes {stable_mosaic.version = 11 : i64} {
  func.func @_mm_bias_kernel(%arg0: i32, %arg1: memref<32x512xbf16, #tpu.memory_space<vmem>>, %arg2: memref<512x64xbf16, #tpu.memory_space<vmem>>, %arg3: memref<1x64xf32, #tpu.memory_space<vmem>>, %arg4: memref<32x64xbf16, #tpu.memory_space<vmem>>) attributes {dimension_semantics = [#tpu.dimension_semantics<parallel>], iteration_bounds = array<i64: 1>, scalar_prefetch = 0 : i64, scratch_operands = 0 : i64, tpu.core_type = #tpu.core_type<tc>, window_params = [{transform_indices = @transform_0, window_bounds = array<i64: 32, 512>}, {pipeline_mode = #tpu.pipeline_mode<synchronous>, transform_indices = @transform_1, window_bounds = array<i64: 512, 64>}, {pipeline_mode = #tpu.pipeline_mode<synchronous>, transform_indices = @transform_2, window_bounds = array<i64: 1, 64>}, {transform_indices = @transform_3, window_bounds = array<i64: 32, 64>}]} {
    %c0 = arith.constant 0 : index
    %c0_0 = arith.constant 0 : index
    %0 = vector.load %arg1[%c0, %c0_0] : memref<32x512xbf16, #tpu.memory_space<vmem>>, vector<32x512xbf16>
    %c0_1 = arith.constant 0 : index
    %c0_2 = arith.constant 0 : index
    %1 = vector.load %arg2[%c0_1, %c0_2] : memref<512x64xbf16, #tpu.memory_space<vmem>>, vector<512x64xbf16>
    %cst = arith.constant dense<0.000000e+00> : vector<32x64xf32>
    %2 = tpu.matmul %0, %1, %cst {dimension_numbers = #tpu.dot_dimension_numbers<[1], [0], [0], [1], [0, 0, 1, 1], [], []>} : vector<32x512xbf16>, vector<512x64xbf16>, vector<32x64xf32> -> vector<32x64xf32>
    %c0_3 = arith.constant 0 : index
    %c0_4 = arith.constant 0 : index
    %3 = vector.load %arg3[%c0_3, %c0_4] : memref<1x64xf32, #tpu.memory_space<vmem>>, vector<1x64xf32>
    %4 = vector.broadcast %3 : vector<1x64xf32> to vector<32x64xf32>
    %5 = arith.addf %2, %4 : vector<32x64xf32>
    %cst_5 = arith.constant 0.000000e+00 : f32
    %6 = vector.broadcast %cst_5 : f32 to vector<32x64xf32>
    %7 = arith.maximumf %5, %6 : vector<32x64xf32>
    %8 = arith.truncf %7 : vector<32x64xf32> to vector<32x64xbf16>
    %c0_6 = arith.constant 0 : index
    %c0_7 = arith.constant 0 : index
    %9 = vector.load %arg4[%c0_6, %c0_7] : memref<32x64xbf16, #tpu.memory_space<vmem>>, vector<32x64xbf16>
    tpu.vector_store %arg4[%c0_6, %c0_7], %8 {strides = array<i32>} : memref<32x64xbf16, #tpu.memory_space<vmem>>, vector<32x64xbf16>,
    return
  }
  func.func @transform_0(%arg0: i32) -> (i32, i32) {
    %c0_i32 = arith.constant 0 : i32
    %c0_i32_0 = arith.constant 0 : i32
    return %arg0, %c0_i32 : i32, i32
  }
  func.func @transform_1(%arg0: i32) -> (i32, i32) {
    %c0_i32 = arith.constant 0 : i32
    %c0_i32_0 = arith.constant 0 : i32
    %c0_i32_1 = arith.constant 0 : i32
    return %c0_i32, %c0_i32_0 : i32, i32
  }
  func.func @transform_2(%arg0: i32) -> (i32, i32) {
    %c0_i32 = arith.constant 0 : i32
    %c0_i32_0 = arith.constant 0 : i32
    %c0_i32_1 = arith.constant 0 : i32
    return %c0_i32, %c0_i32_0 : i32, i32
  }
  func.func @transform_3(%arg0: i32) -> (i32, i32) {
    %c0_i32 = arith.constant 0 : i32
    %c0_i32_0 = arith.constant 0 : i32
    return %arg0, %c0_i32 : i32, i32
  }
}

module attributes {stable_mosaic.version = 11 : i64} {
  func.func @_mm_bias_kernel(%arg0: i32, %arg1: memref<16x576xbf16, #tpu.memory_space<vmem>>, %arg2: memref<576x64xbf16, #tpu.memory_space<vmem>>, %arg3: memref<1x64xf32, #tpu.memory_space<vmem>>, %arg4: memref<16x64xbf16, #tpu.memory_space<vmem>>) attributes {dimension_semantics = [#tpu.dimension_semantics<parallel>], iteration_bounds = array<i64: 1>, scalar_prefetch = 0 : i64, scratch_operands = 0 : i64, tpu.core_type = #tpu.core_type<tc>, window_params = [{transform_indices = @transform_0, window_bounds = array<i64: 16, 576>}, {pipeline_mode = #tpu.pipeline_mode<synchronous>, transform_indices = @transform_1, window_bounds = array<i64: 576, 64>}, {pipeline_mode = #tpu.pipeline_mode<synchronous>, transform_indices = @transform_2, window_bounds = array<i64: 1, 64>}, {transform_indices = @transform_3, window_bounds = array<i64: 16, 64>}]} {
    %c0 = arith.constant 0 : index
    %c0_0 = arith.constant 0 : index
    %0 = vector.load %arg1[%c0, %c0_0] : memref<16x576xbf16, #tpu.memory_space<vmem>>, vector<16x576xbf16>
    %c0_1 = arith.constant 0 : index
    %c0_2 = arith.constant 0 : index
    %1 = vector.load %arg2[%c0_1, %c0_2] : memref<576x64xbf16, #tpu.memory_space<vmem>>, vector<576x64xbf16>
    %cst = arith.constant dense<0.000000e+00> : vector<16x64xf32>
    %2 = tpu.matmul %0, %1, %cst {dimension_numbers = #tpu.dot_dimension_numbers<[1], [0], [0], [1], [0, 0, 1, 1], [], []>} : vector<16x576xbf16>, vector<576x64xbf16>, vector<16x64xf32> -> vector<16x64xf32>
    %c0_3 = arith.constant 0 : index
    %c0_4 = arith.constant 0 : index
    %3 = vector.load %arg3[%c0_3, %c0_4] : memref<1x64xf32, #tpu.memory_space<vmem>>, vector<1x64xf32>
    %4 = vector.broadcast %3 : vector<1x64xf32> to vector<16x64xf32>
    %5 = arith.addf %2, %4 : vector<16x64xf32>
    %cst_5 = arith.constant 0.000000e+00 : f32
    %6 = vector.broadcast %cst_5 : f32 to vector<16x64xf32>
    %7 = arith.maximumf %5, %6 : vector<16x64xf32>
    %8 = arith.truncf %7 : vector<16x64xf32> to vector<16x64xbf16>
    %c0_6 = arith.constant 0 : index
    %c0_7 = arith.constant 0 : index
    %9 = vector.load %arg4[%c0_6, %c0_7] : memref<16x64xbf16, #tpu.memory_space<vmem>>, vector<16x64xbf16>
    tpu.vector_store %arg4[%c0_6, %c0_7], %8 {strides = array<i32>} : memref<16x64xbf16, #tpu.memory_space<vmem>>, vector<16x64xbf16>,
    return
  }
  func.func @transform_0(%arg0: i32) -> (i32, i32) {
    %c0_i32 = arith.constant 0 : i32
    %c0_i32_0 = arith.constant 0 : i32
    return %arg0, %c0_i32 : i32, i32
  }
  func.func @transform_1(%arg0: i32) -> (i32, i32) {
    %c0_i32 = arith.constant 0 : i32
    %c0_i32_0 = arith.constant 0 : i32
    %c0_i32_1 = arith.constant 0 : i32
    return %c0_i32, %c0_i32_0 : i32, i32
  }
  func.func @transform_2(%arg0: i32) -> (i32, i32) {
    %c0_i32 = arith.constant 0 : i32
    %c0_i32_0 = arith.constant 0 : i32
    %c0_i32_1 = arith.constant 0 : i32
    return %c0_i32, %c0_i32_0 : i32, i32
  }
  func.func @transform_3(%arg0: i32) -> (i32, i32) {
    %c0_i32 = arith.constant 0 : i32
    %c0_i32_0 = arith.constant 0 : i32
    return %arg0, %c0_i32 : i32, i32
  }
}

module attributes {stable_mosaic.version = 11 : i64} {
  func.func @_mlp_head_kernel(%arg0: i32, %arg1: memref<16x64xbf16, #tpu.memory_space<vmem>>, %arg2: memref<64x512xbf16, #tpu.memory_space<vmem>>, %arg3: memref<1x512xf32, #tpu.memory_space<vmem>>, %arg4: memref<512x6xbf16, #tpu.memory_space<vmem>>, %arg5: memref<1x6xf32, #tpu.memory_space<vmem>>, %arg6: memref<16x6xf32, #tpu.memory_space<vmem>>) attributes {dimension_semantics = [#tpu.dimension_semantics<parallel>], iteration_bounds = array<i64: 1>, scalar_prefetch = 0 : i64, scratch_operands = 0 : i64, tpu.core_type = #tpu.core_type<tc>, window_params = [{transform_indices = @transform_0, window_bounds = array<i64: 16, 64>}, {pipeline_mode = #tpu.pipeline_mode<synchronous>, transform_indices = @transform_1, window_bounds = array<i64: 64, 512>}, {pipeline_mode = #tpu.pipeline_mode<synchronous>, transform_indices = @transform_2, window_bounds = array<i64: 1, 512>}, {pipeline_mode = #tpu.pipeline_mode<synchronous>, transform_indices = @transform_3, window_bounds = array<i64: 512, 6>}, {pipeline_mode = #tpu.pipeline_mode<synchronous>, transform_indices = @transform_4, window_bounds = array<i64: 1, 6>}, {transform_indices = @transform_5, window_bounds = array<i64: 16, 6>}]} {
    %c0 = arith.constant 0 : index
    %c0_0 = arith.constant 0 : index
    %0 = vector.load %arg1[%c0, %c0_0] : memref<16x64xbf16, #tpu.memory_space<vmem>>, vector<16x64xbf16>
    %c0_1 = arith.constant 0 : index
    %c0_2 = arith.constant 0 : index
    %1 = vector.load %arg2[%c0_1, %c0_2] : memref<64x512xbf16, #tpu.memory_space<vmem>>, vector<64x512xbf16>
    %cst = arith.constant dense<0.000000e+00> : vector<16x512xf32>
    %2 = tpu.matmul %0, %1, %cst {dimension_numbers = #tpu.dot_dimension_numbers<[1], [0], [0], [1], [0, 0, 1, 1], [], []>} : vector<16x64xbf16>, vector<64x512xbf16>, vector<16x512xf32> -> vector<16x512xf32>
    %c0_3 = arith.constant 0 : index
    %c0_4 = arith.constant 0 : index
    %3 = vector.load %arg3[%c0_3, %c0_4] : memref<1x512xf32, #tpu.memory_space<vmem>>, vector<1x512xf32>
    %4 = vector.broadcast %3 : vector<1x512xf32> to vector<16x512xf32>
    %5 = arith.addf %2, %4 : vector<16x512xf32>
    %cst_5 = arith.constant 0.000000e+00 : f32
    %6 = vector.broadcast %cst_5 : f32 to vector<16x512xf32>
    %7 = arith.maximumf %5, %6 : vector<16x512xf32>
    %8 = arith.truncf %7 : vector<16x512xf32> to vector<16x512xbf16>
    %c0_6 = arith.constant 0 : index
    %c0_7 = arith.constant 0 : index
    %9 = vector.load %arg4[%c0_6, %c0_7] : memref<512x6xbf16, #tpu.memory_space<vmem>>, vector<512x6xbf16>
    %cst_8 = arith.constant dense<0.000000e+00> : vector<16x6xf32>
    %10 = tpu.matmul %8, %9, %cst_8 {dimension_numbers = #tpu.dot_dimension_numbers<[1], [0], [0], [1], [0, 0, 1, 1], [], []>} : vector<16x512xbf16>, vector<512x6xbf16>, vector<16x6xf32> -> vector<16x6xf32>
    %c0_9 = arith.constant 0 : index
    %c0_10 = arith.constant 0 : index
    %11 = vector.load %arg5[%c0_9, %c0_10] : memref<1x6xf32, #tpu.memory_space<vmem>>, vector<1x6xf32>
    %12 = vector.broadcast %11 : vector<1x6xf32> to vector<16x6xf32>
    %13 = arith.addf %10, %12 : vector<16x6xf32>
    %c0_11 = arith.constant 0 : index
    %c0_12 = arith.constant 0 : index
    %14 = vector.load %arg6[%c0_11, %c0_12] : memref<16x6xf32, #tpu.memory_space<vmem>>, vector<16x6xf32>
    tpu.vector_store %arg6[%c0_11, %c0_12], %13 {strides = array<i32>} : memref<16x6xf32, #tpu.memory_space<vmem>>, vector<16x6xf32>,
    return
  }
  func.func @transform_0(%arg0: i32) -> (i32, i32) {
    %c0_i32 = arith.constant 0 : i32
    %c0_i32_0 = arith.constant 0 : i32
    return %arg0, %c0_i32 : i32, i32
  }
  func.func @transform_1(%arg0: i32) -> (i32, i32) {
    %c0_i32 = arith.constant 0 : i32
    %c0_i32_0 = arith.constant 0 : i32
    %c0_i32_1 = arith.constant 0 : i32
    return %c0_i32, %c0_i32_0 : i32, i32
  }
  func.func @transform_2(%arg0: i32) -> (i32, i32) {
    %c0_i32 = arith.constant 0 : i32
    %c0_i32_0 = arith.constant 0 : i32
    %c0_i32_1 = arith.constant 0 : i32
    return %c0_i32, %c0_i32_0 : i32, i32
  }
  func.func @transform_3(%arg0: i32) -> (i32, i32) {
    %c0_i32 = arith.constant 0 : i32
    %c0_i32_0 = arith.constant 0 : i32
    %c0_i32_1 = arith.constant 0 : i32
    return %c0_i32, %c0_i32_0 : i32, i32
  }
  func.func @transform_4(%arg0: i32) -> (i32, i32) {
    %c0_i32 = arith.constant 0 : i32
    %c0_i32_0 = arith.constant 0 : i32
    %c0_i32_1 = arith.constant 0 : i32
    return %c0_i32, %c0_i32_0 : i32, i32
  }
  func.func @transform_5(%arg0: i32) -> (i32, i32) {
    %c0_i32 = arith.constant 0 : i32
    %c0_i32_0 = arith.constant 0 : i32
    return %arg0, %c0_i32 : i32, i32
  }
}

</mosaic_0001>

<llo_original>
// kernel: dqn_forward.4
$region0: #{dqn_forward.4}
  #allocation0 [shape = 'u32[]', space=smem, size = 0x4, offset = 0x4, fixed_abs, tag = 'smem constant byte address 0x4 - core index']
  #allocation1 [shape = 'u32[72,128]{1,0:T(1,128)}', space=vmem, size = 0x9000, scoped, tag = 'internal scratch']
  %s0 = inlined_call_operand.vmem [shape: bf16[128,256], index: 0, kind: input, shape index: {}]
  %s1 = inlined_call_operand.vmem [shape: bf16[256,32], index: 1, kind: input, shape index: {}]
  %s2 = inlined_call_operand.vmem [shape: f32[1,32], index: 2, kind: input, shape index: {}]
  %s3 = inlined_call_operand.vmem [shape: bf16[128,32], index: 3, kind: output, shape index: {}]
  %s4 = sld [smem:[#allocation0]]
  $region22: #{dqn_forward.4} parent=0
    _
  %s6 = ssub.s32 1, %s4
  %s7 = scalar_select 0, %s6, %s4
  // Predicated region
  $region2: #{dqn_forward.4} parent=0 // pred_check
    _
  $region3: #{dqn_forward.4} parent=0 // pred_check_branch
    %9 = sbr.rel (0) target = $region5
  $region4: #{dqn_forward.4} parent=0 // pred_region
    _
  $region5: #{dqn_forward.4} parent=0 // pred_fallthru
    _
  // Predicated region
  $region6: #{dqn_forward.4} parent=0 // pred_check
    _
  $region7: #{dqn_forward.4} parent=0 // pred_check_branch
    %11 = sbr.rel (0) target = $region9
  $region8: #{dqn_forward.4} parent=0 // pred_region
    _
  $region9: #{dqn_forward.4} parent=0 // pred_fallthru
    _
  // Predicated region
  $region10: #{dqn_forward.4} parent=0 // pred_check
    _
  $region11: #{dqn_forward.4} parent=0 // pred_check_branch
    %13 = sbr.rel (0) target = $region13
  $region12: #{dqn_forward.4} parent=0 // pred_region
    _
  $region13: #{dqn_forward.4} parent=0 // pred_fallthru
    _
  %v14 = vld [vmem:[%s0] sm:$0xff]
  %v15 = vld [vmem:[%s0 + $0x8] sm:$0xff]
  %v16 = vld [vmem:[%s0 + $0x10] sm:$0xff]
  %v17 = vld [vmem:[%s0 + $0x18] sm:$0xff]
  %v18 = vld [vmem:[%s0 + $0x20] sm:$0xff]
  %v19 = vld [vmem:[%s0 + $0x28] sm:$0xff]
  %v20 = vld [vmem:[%s0 + $0x30] sm:$0xff]
  %v21 = vld [vmem:[%s0 + $0x38] sm:$0xff]
  %v22 = vld [vmem:[%s0 + $0x40] sm:$0xff]
  %v23 = vld [vmem:[%s0 + $0x48] sm:$0xff]
  %v24 = vld [vmem:[%s0 + $0x50] sm:$0xff]
  %v25 = vld [vmem:[%s0 + $0x58] sm:$0xff]
  %v26 = vld [vmem:[%s0 + $0x60] sm:$0xff]
  %v27 = vld [vmem:[%s0 + $0x68] sm:$0xff]
  %v28 = vld [vmem:[%s0 + $0x70] sm:$0xff]
  %v29 = vld [vmem:[%s0 + $0x78] sm:$0xff]
  %v30 = vld [vmem:[%s1] sm:$0xf]
  %v31 = vld [vmem:[%s1 + $0x4] sm:$0xf]
  %v32 = vld [vmem:[%s1 + $0x8] sm:$0xf]
  %v33 = vld [vmem:[%s1 + $0xc] sm:$0xf]
  %v34 = vld [vmem:[%s1 + $0x10] sm:$0xf]
  %v35 = vld [vmem:[%s1 + $0x14] sm:$0xf]
  %v36 = vld [vmem:[%s1 + $0x18] sm:$0xf]
  %v37 = vld [vmem:[%s1 + $0x1c] sm:$0xf]
  %v38 = vld [vmem:[%s1 + $0x20] sm:$0xf]
  %v39 = vld [vmem:[%s1 + $0x24] sm:$0xf]
  %v40 = vld [vmem:[%s1 + $0x28] sm:$0xf]
  %v41 = vld [vmem:[%s1 + $0x2c] sm:$0xf]
  %v42 = vld [vmem:[%s1 + $0x30] sm:$0xf]
  %v43 = vld [vmem:[%s1 + $0x34] sm:$0xf]
  %v44 = vld [vmem:[%s1 + $0x38] sm:$0xf]
  %v45 = vld [vmem:[%s1 + $0x3c] sm:$0xf]
  %v46 = vld [vmem:[%s1 + $0x40] sm:$0xf]
  %v47 = vld [vmem:[%s1 + $0x44] sm:$0xf]
  %v48 = vld [vmem:[%s1 + $0x48] sm:$0xf]
  %v49 = vld [vmem:[%s1 + $0x4c] sm:$0xf]
  %v50 = vld [vmem:[%s1 + $0x50] sm:$0xf]
  %v51 = vld [vmem:[%s1 + $0x54] sm:$0xf]
  %v52 = vld [vmem:[%s1 + $0x58] sm:$0xf]
  %v53 = vld [vmem:[%s1 + $0x5c] sm:$0xf]
  %v54 = vld [vmem:[%s1 + $0x60] sm:$0xf]
  %v55 = vld [vmem:[%s1 + $0x64] sm:$0xf]
  %v56 = vld [vmem:[%s1 + $0x68] sm:$0xf]
  %v57 = vld [vmem:[%s1 + $0x6c] sm:$0xf]
  %v58 = vld [vmem:[%s1 + $0x70] sm:$0xf]
  %v59 = vld [vmem:[%s1 + $0x74] sm:$0xf]
  %v60 = vld [vmem:[%s1 + $0x78] sm:$0xf]
  %v61 = vld [vmem:[%s1 + $0x7c] sm:$0xf]
  %v62 = vld [vmem:[%s2] sm:$0x1]
  %v64 = vperm.slane %v62, 0
  %v82 = vunpack.c.l.b16 %v14
  %v83 = vunpack.c.h.b16 %v14
  %v84 = vunpack.c.l.b16 %v15
  %v85 = vunpack.c.h.b16 %v15
  %v86 = vunpack.c.l.b16 %v16
  %v87 = vunpack.c.h.b16 %v16
  %v88 = vunpack.c.l.b16 %v17
  %v89 = vunpack.c.h.b16 %v17
  %v90 = vunpack.c.l.b16 %v18
  %v91 = vunpack.c.h.b16 %v18
  %v92 = vunpack.c.l.b16 %v19
  %v93 = vunpack.c.h.b16 %v19
  %v94 = vunpack.c.l.b16 %v20
  %v95 = vunpack.c.h.b16 %v20
  %v96 = vunpack.c.l.b16 %v21
  %v97 = vunpack.c.h.b16 %v21
  %v98 = vunpack.c.l.b16 %v22
  %v99 = vunpack.c.h.b16 %v22
  %v100 = vunpack.c.l.b16 %v23
  %v101 = vunpack.c.h.b16 %v23
  %v102 = vunpack.c.l.b16 %v24
  %v103 = vunpack.c.h.b16 %v24
  %v104 = vunpack.c.l.b16 %v25
  %v105 = vunpack.c.h.b16 %v25
  %v106 = vunpack.c.l.b16 %v26
  %v107 = vunpack.c.h.b16 %v26
  %v108 = vunpack.c.l.b16 %v27
  %v109 = vunpack.c.h.b16 %v27
  %v110 = vunpack.c.l.b16 %v28
  %v111 = vunpack.c.h.b16 %v28
  %v112 = vunpack.c.l.b16 %v29
  %v113 = vunpack.c.h.b16 %v29
  %v114 = vpack.c.b16 %v84, %v82
  %v115 = vpack.c.b16 %v85, %v83
  %v116 = vpack.c.b16 %v88, %v86
  %v117 = vpack.c.b16 %v89, %v87
  %v118 = vpack.c.b16 %v92, %v90
  %v119 = vpack.c.b16 %v93, %v91
  %v120 = vpack.c.b16 %v96, %v94
  %v121 = vpack.c.b16 %v97, %v95
  %v122 = vpack.c.b16 %v100, %v98
  %v123 = vpack.c.b16 %v101, %v99
  %v124 = vpack.c.b16 %v104, %v102
  %v125 = vpack.c.b16 %v105, %v103
  %v126 = vpack.c.b16 %v108, %v106
  %v127 = vpack.c.b16 %v109, %v107
  %v128 = vpack.c.b16 %v112, %v110
  %v129 = vpack.c.b16 %v113, %v111
  %v178 = vunpack.c.l.b16 %v30
  %v179 = vunpack.c.l.b16 %v31
  %v180 = vunpack.c.l.b16 %v32
  %v181 = vunpack.c.l.b16 %v33
  %v182 = vunpack.c.l.b16 %v34
  %v183 = vunpack.c.l.b16 %v35
  %v184 = vunpack.c.l.b16 %v36
  %v185 = vunpack.c.l.b16 %v37
  %v186 = vunpack.c.l.b16 %v38
  %v187 = vunpack.c.l.b16 %v39
  %v188 = vunpack.c.l.b16 %v40
  %v189 = vunpack.c.l.b16 %v41
  %v190 = vunpack.c.l.b16 %v42
  %v191 = vunpack.c.l.b16 %v43
  %v192 = vunpack.c.l.b16 %v44
  %v193 = vunpack.c.l.b16 %v45
  %v194 = vunpack.c.l.b16 %v46
  %v195 = vunpack.c.l.b16 %v47
  %v196 = vunpack.c.l.b16 %v48
  %v197 = vunpack.c.l.b16 %v49
  %v198 = vunpack.c.l.b16 %v50
  %v199 = vunpack.c.l.b16 %v51
  %v200 = vunpack.c.l.b16 %v52
  %v201 = vunpack.c.l.b16 %v53
  %v202 = vunpack.c.l.b16 %v54
  %v203 = vunpack.c.l.b16 %v55
  %v204 = vunpack.c.l.b16 %v56
  %v205 = vunpack.c.l.b16 %v57
  %v206 = vunpack.c.l.b16 %v58
  %v207 = vunpack.c.l.b16 %v59
  %v208 = vunpack.c.l.b16 %v60
  %v209 = vunpack.c.l.b16 %v61
  %v210 = vpack.c.b16 %v179, %v178
  %v211 = vpack.c.b16 %v181, %v180
  %v212 = vpack.c.b16 %v183, %v182
  %v213 = vpack.c.b16 %v185, %v184
  %v214 = vpack.c.b16 %v187, %v186
  %v215 = vpack.c.b16 %v189, %v188
  %v216 = vpack.c.b16 %v191, %v190
  %v217 = vpack.c.b16 %v193, %v192
  %v218 = vpack.c.b16 %v195, %v194
  %v219 = vpack.c.b16 %v197, %v196
  %v220 = vpack.c.b16 %v199, %v198
  %v221 = vpack.c.b16 %v201, %v200
  %v222 = vpack.c.b16 %v203, %v202
  %v223 = vpack.c.b16 %v205, %v204
  %v224 = vpack.c.b16 %v207, %v206
  %v225 = vpack.c.b16 %v209, %v208
  %242 = vmatpush.bf16.msra.mxu0 %v217
  %243 = vmatpush.bf16.msra.mxu0 %v216
  %244 = vmatpush.bf16.msra.mxu0 %v215
  %245 = vmatpush.bf16.msra.mxu0 %v214
  %246 = vmatpush.bf16.msra.mxu0 %v213
  %247 = vmatpush.bf16.msra.mxu0 %v212
  %248 = vmatpush.bf16.msra.mxu0 %v211
  %249 = vmatpush.bf16.msra.mxu0 %v210
  %250 = vmatmul.bf16.gmra.mxu0 %v114
  %v251 = vpop.f32.mrf.mxu0
  %v252 = vadd.f32 %v64, %v251
  %v253 = vpop.f32.mrf.mxu0
  %v254 = vadd.f32 %v64, %v253
  %255 = vmatmul.bf16.gmra.mxu0 %v116
  %v256 = vpop.f32.mrf.mxu0
  %v257 = vadd.f32 %v64, %v256
  %v258 = vpop.f32.mrf.mxu0
  %v259 = vadd.f32 %v64, %v258
  %260 = vmatmul.bf16.gmra.mxu0 %v118
  %v261 = vpop.f32.mrf.mxu0
  %v262 = vadd.f32 %v64, %v261
  %v263 = vpop.f32.mrf.mxu0
  %v264 = vadd.f32 %v64, %v263
  %265 = vmatmul.bf16.gmra.mxu0 %v120
  %v266 = vpop.f32.mrf.mxu0
  %v267 = vadd.f32 %v64, %v266
  %v268 = vpop.f32.mrf.mxu0
  %v269 = vadd.f32 %v64, %v268
  %270 = vmatmul.bf16.gmra.mxu0 %v122
  %v271 = vpop.f32.mrf.mxu0
  %v272 = vadd.f32 %v64, %v271
  %v273 = vpop.f32.mrf.mxu0
  %v274 = vadd.f32 %v64, %v273
  %275 = vmatmul.bf16.gmra.mxu0 %v124
  %v276 = vpop.f32.mrf.mxu0
  %v277 = vadd.f32 %v64, %v276
  %v278 = vpop.f32.mrf.mxu0
  %v279 = vadd.f32 %v64, %v278
  %280 = vmatmul.bf16.gmra.mxu0 %v126
  %v281 = vpop.f32.mrf.mxu0
  %v282 = vadd.f32 %v64, %v281
  %v283 = vpop.f32.mrf.mxu0
  %v284 = vadd.f32 %v64, %v283
  %285 = vmatmul.bf16.gmra.mxu0 %v128
  %v286 = vpop.f32.mrf.mxu0
  %v287 = vadd.f32 %v64, %v286
  %v288 = vpop.f32.mrf.mxu0
  %v289 = vadd.f32 %v64, %v288
  %290 = vdwg.mxu0
  %291 = vmatpush.bf16.msra.mxu0 %v225
  %292 = vmatpush.bf16.msra.mxu0 %v224
  %293 = vmatpush.bf16.msra.mxu0 %v223
  %294 = vmatpush.bf16.msra.mxu0 %v222
  %295 = vmatpush.bf16.msra.mxu0 %v221
  %296 = vmatpush.bf16.msra.mxu0 %v220
  %297 = vmatpush.bf16.msra.mxu0 %v219
  %298 = vmatpush.bf16.msra.mxu0 %v218
  %299 = vmatmul.bf16.gmra.mxu0 %v115
  %v300 = vpop.f32.mrf.mxu0
  %v301 = vadd.f32 %v252, %v300
  %v302 = vpop.f32.mrf.mxu0
  %v303 = vadd.f32 %v254, %v302
  %304 = vmatmul.bf16.gmra.mxu0 %v117
  %v305 = vpop.f32.mrf.mxu0
  %v306 = vadd.f32 %v257, %v305
  %v307 = vpop.f32.mrf.mxu0
  %v308 = vadd.f32 %v259, %v307
  %309 = vmatmul.bf16.gmra.mxu0 %v119
  %v310 = vpop.f32.mrf.mxu0
  %v311 = vadd.f32 %v262, %v310
  %v312 = vpop.f32.mrf.mxu0
  %v313 = vadd.f32 %v264, %v312
  %314 = vmatmul.bf16.gmra.mxu0 %v121
  %v315 = vpop.f32.mrf.mxu0
  %v316 = vadd.f32 %v267, %v315
  %v317 = vpop.f32.mrf.mxu0
  %v318 = vadd.f32 %v269, %v317
  %319 = vmatmul.bf16.gmra.mxu0 %v123
  %v320 = vpop.f32.mrf.mxu0
  %v321 = vadd.f32 %v272, %v320
  %v322 = vpop.f32.mrf.mxu0
  %v323 = vadd.f32 %v274, %v322
  %324 = vmatmul.bf16.gmra.mxu0 %v125
  %v325 = vpop.f32.mrf.mxu0
  %v326 = vadd.f32 %v277, %v325
  %v327 = vpop.f32.mrf.mxu0
  %v328 = vadd.f32 %v279, %v327
  %329 = vmatmul.bf16.gmra.mxu0 %v127
  %v330 = vpop.f32.mrf.mxu0
  %v331 = vadd.f32 %v282, %v330
  %v332 = vpop.f32.mrf.mxu0
  %v333 = vadd.f32 %v284, %v332
  %334 = vmatmul.bf16.gmra.mxu0 %v129
  %v335 = vpop.f32.mrf.mxu0
  %v336 = vadd.f32 %v287, %v335
  %v337 = vpop.f32.mrf.mxu0
  %v338 = vadd.f32 %v289, %v337
  %339 = vdwg.mxu0
  %v340 = vmax.f32 %v301, 0.0
  %v341 = vmax.f32 %v303, 0.0
  %v342 = vmax.f32 %v306, 0.0
  %v343 = vmax.f32 %v308, 0.0
  %v344 = vmax.f32 %v311, 0.0
  %v345 = vmax.f32 %v313, 0.0
  %v346 = vmax.f32 %v316, 0.0
  %v347 = vmax.f32 %v318, 0.0
  %v348 = vmax.f32 %v321, 0.0
  %v349 = vmax.f32 %v323, 0.0
  %v350 = vmax.f32 %v326, 0.0
  %v351 = vmax.f32 %v328, 0.0
  %v352 = vmax.f32 %v331, 0.0
  %v353 = vmax.f32 %v333, 0.0
  %v354 = vmax.f32 %v336, 0.0
  %v355 = vmax.f32 %v338, 0.0
  %v356 = vpack.c.bf16 %v340, %v340
  %v357 = vpack.c.bf16 %v341, %v341
  %v358 = vpack.c.bf16 %v342, %v342
  %v359 = vpack.c.bf16 %v343, %v343
  %v360 = vpack.c.bf16 %v344, %v344
  %v361 = vpack.c.bf16 %v345, %v345
  %v362 = vpack.c.bf16 %v346, %v346
  %v363 = vpack.c.bf16 %v347, %v347
  %v364 = vpack.c.bf16 %v348, %v348
  %v365 = vpack.c.bf16 %v349, %v349
  %v366 = vpack.c.bf16 %v350, %v350
  %v367 = vpack.c.bf16 %v351, %v351
  %v368 = vpack.c.bf16 %v352, %v352
  %v369 = vpack.c.bf16 %v353, %v353
  %v370 = vpack.c.bf16 %v354, %v354
  %v371 = vpack.c.bf16 %v355, %v355
  %vm372 = vcmask 257024
  %373 = vst.msk [vmem:[%s3] sm:$0xf] %vm372, %v356
  %374 = vst.msk [vmem:[%s3 + $0x4] sm:$0xf] %vm372, %v357
  %375 = vst.msk [vmem:[%s3 + $0x8] sm:$0xf] %vm372, %v358
  %376 = vst.msk [vmem:[%s3 + $0xc] sm:$0xf] %vm372, %v359
  %377 = vst.msk [vmem:[%s3 + $0x10] sm:$0xf] %vm372, %v360
  %378 = vst.msk [vmem:[%s3 + $0x14] sm:$0xf] %vm372, %v361
  %379 = vst.msk [vmem:[%s3 + $0x18] sm:$0xf] %vm372, %v362
  %380 = vst.msk [vmem:[%s3 + $0x1c] sm:$0xf] %vm372, %v363
  %381 = vst.msk [vmem:[%s3 + $0x20] sm:$0xf] %vm372, %v364
  %382 = vst.msk [vmem:[%s3 + $0x24] sm:$0xf] %vm372, %v365
  %383 = vst.msk [vmem:[%s3 + $0x28] sm:$0xf] %vm372, %v366
  %384 = vst.msk [vmem:[%s3 + $0x2c] sm:$0xf] %vm372, %v367
  %385 = vst.msk [vmem:[%s3 + $0x30] sm:$0xf] %vm372, %v368
  %386 = vst.msk [vmem:[%s3 + $0x34] sm:$0xf] %vm372, %v369
  %387 = vst.msk [vmem:[%s3 + $0x38] sm:$0xf] %vm372, %v370
  %388 = vst.msk [vmem:[%s3 + $0x3c] sm:$0xf] %vm372, %v371
  // Predicated region
  $region14: #{dqn_forward.4} parent=0 // pred_check
    _
  $region15: #{dqn_forward.4} parent=0 // pred_check_branch
    %390 = sbr.rel (0) target = $region17
  $region16: #{dqn_forward.4} parent=0 // pred_region
    _
  $region17: #{dqn_forward.4} parent=0 // pred_fallthru
    _
  // Predicated region
  $region18: #{dqn_forward.4} parent=0 // pred_check
    _
  $region19: #{dqn_forward.4} parent=0 // pred_check_branch
    %392 = sbr.rel (0) target = $region21
  $region20: #{dqn_forward.4} parent=0 // pred_region
    _
  $region21: #{dqn_forward.4} parent=0 // pred_fallthru
    _

// kernel: dqn_forward.5
$region0: #{dqn_forward.5}
  #allocation0 [shape = 'u32[]', space=smem, size = 0x4, offset = 0x4, fixed_abs, tag = 'smem constant byte address 0x4 - core index']
  #allocation1 [shape = 'u32[72,128]{1,0:T(1,128)}', space=vmem, size = 0x9000, scoped, tag = 'internal scratch']
  %s0 = inlined_call_operand.vmem [shape: bf16[32,512], index: 0, kind: input, shape index: {}]
  %s1 = inlined_call_operand.vmem [shape: bf16[512,64], index: 1, kind: input, shape index: {}]
  %s2 = inlined_call_operand.vmem [shape: f32[1,64], index: 2, kind: input, shape index: {}]
  %s3 = inlined_call_operand.vmem [shape: bf16[32,64], index: 3, kind: output, shape index: {}]
  %s4 = sld [smem:[#allocation0]]
  $region22: #{dqn_forward.5} parent=0
    _
  %s6 = ssub.s32 1, %s4
  %s7 = scalar_select 0, %s6, %s4
  // Predicated region
  $region2: #{dqn_forward.5} parent=0 // pred_check
    _
  $region3: #{dqn_forward.5} parent=0 // pred_check_branch
    %9 = sbr.rel (0) target = $region5
  $region4: #{dqn_forward.5} parent=0 // pred_region
    _
  $region5: #{dqn_forward.5} parent=0 // pred_fallthru
    _
  // Predicated region
  $region6: #{dqn_forward.5} parent=0 // pred_check
    _
  $region7: #{dqn_forward.5} parent=0 // pred_check_branch
    %11 = sbr.rel (0) target = $region9
  $region8: #{dqn_forward.5} parent=0 // pred_region
    _
  $region9: #{dqn_forward.5} parent=0 // pred_fallthru
    _
  // Predicated region
  $region10: #{dqn_forward.5} parent=0 // pred_check
    _
  $region11: #{dqn_forward.5} parent=0 // pred_check_branch
    %13 = sbr.rel (0) target = $region13
  $region12: #{dqn_forward.5} parent=0 // pred_region
    _
  $region13: #{dqn_forward.5} parent=0 // pred_fallthru
    _
  %v14 = vld [vmem:[%s0] sm:$0xff]
  %v15 = vld [vmem:[%s0 + $0x8] sm:$0xff]
  %v16 = vld [vmem:[%s0 + $0x10] sm:$0xff]
  %v17 = vld [vmem:[%s0 + $0x18] sm:$0xff]
  %v18 = vld [vmem:[%s0 + $0x20] sm:$0xff]
  %v19 = vld [vmem:[%s0 + $0x28] sm:$0xff]
  %v20 = vld [vmem:[%s0 + $0x30] sm:$0xff]
  %v21 = vld [vmem:[%s0 + $0x38] sm:$0xff]
  %v22 = vld [vmem:[%s1] sm:$0xf]
  %v23 = vld [vmem:[%s1 + $0x4] sm:$0xf]
  %v24 = vld [vmem:[%s1 + $0x8] sm:$0xf]
  %v25 = vld [vmem:[%s1 + $0xc] sm:$0xf]
  %v26 = vld [vmem:[%s1 + $0x10] sm:$0xf]
  %v27 = vld [vmem:[%s1 + $0x14] sm:$0xf]
  %v28 = vld [vmem:[%s1 + $0x18] sm:$0xf]
  %v29 = vld [vmem:[%s1 + $0x1c] sm:$0xf]
  %v30 = vld [vmem:[%s1 + $0x20] sm:$0xf]
  %v31 = vld [vmem:[%s1 + $0x24] sm:$0xf]
  %v32 = vld [vmem:[%s1 + $0x28] sm:$0xf]
  %v33 = vld [vmem:[%s1 + $0x2c] sm:$0xf]
  %v34 = vld [vmem:[%s1 + $0x30] sm:$0xf]
  %v35 = vld [vmem:[%s1 + $0x34] sm:$0xf]
  %v36 = vld [vmem:[%s1 + $0x38] sm:$0xf]
  %v37 = vld [vmem:[%s1 + $0x3c] sm:$0xf]
  %v38 = vld [vmem:[%s1 + $0x40] sm:$0xf]
  %v39 = vld [vmem:[%s1 + $0x44] sm:$0xf]
  %v40 = vld [vmem:[%s1 + $0x48] sm:$0xf]
  %v41 = vld [vmem:[%s1 + $0x4c] sm:$0xf]
  %v42 = vld [vmem:[%s1 + $0x50] sm:$0xf]
  %v43 = vld [vmem:[%s1 + $0x54] sm:$0xf]
  %v44 = vld [vmem:[%s1 + $0x58] sm:$0xf]
  %v45 = vld [vmem:[%s1 + $0x5c] sm:$0xf]
  %v46 = vld [vmem:[%s1 + $0x60] sm:$0xf]
  %v47 = vld [vmem:[%s1 + $0x64] sm:$0xf]
  %v48 = vld [vmem:[%s1 + $0x68] sm:$0xf]
  %v49 = vld [vmem:[%s1 + $0x6c] sm:$0xf]
  %v50 = vld [vmem:[%s1 + $0x70] sm:$0xf]
  %v51 = vld [vmem:[%s1 + $0x74] sm:$0xf]
  %v52 = vld [vmem:[%s1 + $0x78] sm:$0xf]
  %v53 = vld [vmem:[%s1 + $0x7c] sm:$0xf]
  %v54 = vld [vmem:[%s1 + $0x80] sm:$0xf]
  %v55 = vld [vmem:[%s1 + $0x84] sm:$0xf]
  %v56 = vld [vmem:[%s1 + $0x88] sm:$0xf]
  %v57 = vld [vmem:[%s1 + $0x8c] sm:$0xf]
  %v58 = vld [vmem:[%s1 + $0x90] sm:$0xf]
  %v59 = vld [vmem:[%s1 + $0x94] sm:$0xf]
  %v60 = vld [vmem:[%s1 + $0x98] sm:$0xf]
  %v61 = vld [vmem:[%s1 + $0x9c] sm:$0xf]
  %v62 = vld [vmem:[%s1 + $0xa0] sm:$0xf]
  %v63 = vld [vmem:[%s1 + $0xa4] sm:$0xf]
  %v64 = vld [vmem:[%s1 + $0xa8] sm:$0xf]
  %v65 = vld [vmem:[%s1 + $0xac] sm:$0xf]
  %v66 = vld [vmem:[%s1 + $0xb0] sm:$0xf]
  %v67 = vld [vmem:[%s1 + $0xb4] sm:$0xf]
  %v68 = vld [vmem:[%s1 + $0xb8] sm:$0xf]
  %v69 = vld [vmem:[%s1 + $0xbc] sm:$0xf]
  %v70 = vld [vmem:[%s1 + $0xc0] sm:$0xf]
  %v71 = vld [vmem:[%s1 + $0xc4] sm:$0xf]
  %v72 = vld [vmem:[%s1 + $0xc8] sm:$0xf]
  %v73 = vld [vmem:[%s1 + $0xcc] sm:$0xf]
  %v74 = vld [vmem:[%s1 + $0xd0] sm:$0xf]
  %v75 = vld [vmem:[%s1 + $0xd4] sm:$0xf]
  %v76 = vld [vmem:[%s1 + $0xd8] sm:$0xf]
  %v77 = vld [vmem:[%s1 + $0xdc] sm:$0xf]
  %v78 = vld [vmem:[%s1 + $0xe0] sm:$0xf]
  %v79 = vld [vmem:[%s1 + $0xe4] sm:$0xf]
  %v80 = vld [vmem:[%s1 + $0xe8] sm:$0xf]
  %v81 = vld [vmem:[%s1 + $0xec] sm:$0xf]
  %v82 = vld [vmem:[%s1 + $0xf0] sm:$0xf]
  %v83 = vld [vmem:[%s1 + $0xf4] sm:$0xf]
  %v84 = vld [vmem:[%s1 + $0xf8] sm:$0xf]
  %v85 = vld [vmem:[%s1 + $0xfc] sm:$0xf]
  %v86 = vld [vmem:[%s2] sm:$0x1]
  %v88 = vperm.slane %v86, 0
  %v98 = vunpack.c.l.b16 %v14
  %v99 = vunpack.c.h.b16 %v14
  %v100 = vunpack.c.l.b16 %v15
  %v101 = vunpack.c.h.b16 %v15
  %v102 = vunpack.c.l.b16 %v16
  %v103 = vunpack.c.h.b16 %v16
  %v104 = vunpack.c.l.b16 %v17
  %v105 = vunpack.c.h.b16 %v17
  %v106 = vunpack.c.l.b16 %v18
  %v107 = vunpack.c.h.b16 %v18
  %v108 = vunpack.c.l.b16 %v19
  %v109 = vunpack.c.h.b16 %v19
  %v110 = vunpack.c.l.b16 %v20
  %v111 = vunpack.c.h.b16 %v20
  %v112 = vunpack.c.l.b16 %v21
  %v113 = vunpack.c.h.b16 %v21
  %v114 = vpack.c.b16 %v102, %v98
  %v115 = vpack.c.b16 %v103, %v99
  %v116 = vpack.c.b16 %v104, %v100
  %v117 = vpack.c.b16 %v105, %v101
  %v118 = vpack.c.b16 %v110, %v106
  %v119 = vpack.c.b16 %v111, %v107
  %v120 = vpack.c.b16 %v112, %v108
  %v121 = vpack.c.b16 %v113, %v109
  %v194 = vunpack.c.l.b16 %v22
  %v195 = vunpack.c.l.b16 %v23
  %v196 = vunpack.c.l.b16 %v24
  %v197 = vunpack.c.l.b16 %v25
  %v198 = vunpack.c.l.b16 %v26
  %v199 = vunpack.c.l.b16 %v27
  %v200 = vunpack.c.l.b16 %v28
  %v201 = vunpack.c.l.b16 %v29
  %v202 = vunpack.c.l.b16 %v30
  %v203 = vunpack.c.l.b16 %v31
  %v204 = vunpack.c.l.b16 %v32
  %v205 = vunpack.c.l.b16 %v33
  %v206 = vunpack.c.l.b16 %v34
  %v207 = vunpack.c.l.b16 %v35
  %v208 = vunpack.c.l.b16 %v36
  %v209 = vunpack.c.l.b16 %v37
  %v210 = vunpack.c.l.b16 %v38
  %v211 = vunpack.c.l.b16 %v39
  %v212 = vunpack.c.l.b16 %v40
  %v213 = vunpack.c.l.b16 %v41
  %v214 = vunpack.c.l.b16 %v42
  %v215 = vunpack.c.l.b16 %v43
  %v216 = vunpack.c.l.b16 %v44
  %v217 = vunpack.c.l.b16 %v45
  %v218 = vunpack.c.l.b16 %v46
  %v219 = vunpack.c.l.b16 %v47
  %v220 = vunpack.c.l.b16 %v48
  %v221 = vunpack.c.l.b16 %v49
  %v222 = vunpack.c.l.b16 %v50
  %v223 = vunpack.c.l.b16 %v51
  %v224 = vunpack.c.l.b16 %v52
  %v225 = vunpack.c.l.b16 %v53
  %v226 = vunpack.c.l.b16 %v54
  %v227 = vunpack.c.l.b16 %v55
  %v228 = vunpack.c.l.b16 %v56
  %v229 = vunpack.c.l.b16 %v57
  %v230 = vunpack.c.l.b16 %v58
  %v231 = vunpack.c.l.b16 %v59
  %v232 = vunpack.c.l.b16 %v60
  %v233 = vunpack.c.l.b16 %v61
  %v234 = vunpack.c.l.b16 %v62
  %v235 = vunpack.c.l.b16 %v63
  %v236 = vunpack.c.l.b16 %v64
  %v237 = vunpack.c.l.b16 %v65
  %v238 = vunpack.c.l.b16 %v66
  %v239 = vunpack.c.l.b16 %v67
  %v240 = vunpack.c.l.b16 %v68
  %v241 = vunpack.c.l.b16 %v69
  %v242 = vunpack.c.l.b16 %v70
  %v243 = vunpack.c.l.b16 %v71
  %v244 = vunpack.c.l.b16 %v72
  %v245 = vunpack.c.l.b16 %v73
  %v246 = vunpack.c.l.b16 %v74
  %v247 = vunpack.c.l.b16 %v75
  %v248 = vunpack.c.l.b16 %v76
  %v249 = vunpack.c.l.b16 %v77
  %v250 = vunpack.c.l.b16 %v78
  %v251 = vunpack.c.l.b16 %v79
  %v252 = vunpack.c.l.b16 %v80
  %v253 = vunpack.c.l.b16 %v81
  %v254 = vunpack.c.l.b16 %v82
  %v255 = vunpack.c.l.b16 %v83
  %v256 = vunpack.c.l.b16 %v84
  %v257 = vunpack.c.l.b16 %v85
  %v258 = vpack.c.b16 %v195, %v194
  %v259 = vpack.c.b16 %v197, %v196
  %v260 = vpack.c.b16 %v199, %v198
  %v261 = vpack.c.b16 %v201, %v200
  %v262 = vpack.c.b16 %v203, %v202
  %v263 = vpack.c.b16 %v205, %v204
  %v264 = vpack.c.b16 %v207, %v206
  %v265 = vpack.c.b16 %v209, %v208
  %v266 = vpack.c.b16 %v211, %v210
  %v267 = vpack.c.b16 %v213, %v212
  %v268 = vpack.c.b16 %v215, %v214
  %v269 = vpack.c.b16 %v217, %v216
  %v270 = vpack.c.b16 %v219, %v218
  %v271 = vpack.c.b16 %v221, %v220
  %v272 = vpack.c.b16 %v223, %v222
  %v273 = vpack.c.b16 %v225, %v224
  %v274 = vpack.c.b16 %v227, %v226
  %v275 = vpack.c.b16 %v229, %v228
  %v276 = vpack.c.b16 %v231, %v230
  %v277 = vpack.c.b16 %v233, %v232
  %v278 = vpack.c.b16 %v235, %v234
  %v279 = vpack.c.b16 %v237, %v236
  %v280 = vpack.c.b16 %v239, %v238
  %v281 = vpack.c.b16 %v241, %v240
  %v282 = vpack.c.b16 %v243, %v242
  %v283 = vpack.c.b16 %v245, %v244
  %v284 = vpack.c.b16 %v247, %v246
  %v285 = vpack.c.b16 %v249, %v248
  %v286 = vpack.c.b16 %v251, %v250
  %v287 = vpack.c.b16 %v253, %v252
  %v288 = vpack.c.b16 %v255, %v254
  %v289 = vpack.c.b16 %v257, %v256
  %322 = vmatpush.bf16.msra.mxu0 %v265
  %323 = vmatpush.bf16.msra.mxu0 %v264
  %324 = vmatpush.bf16.msra.mxu0 %v263
  %325 = vmatpush.bf16.msra.mxu0 %v262
  %326 = vmatpush.bf16.msra.mxu0 %v261
  %327 = vmatpush.bf16.msra.mxu0 %v260
  %328 = vmatpush.bf16.msra.mxu0 %v259
  %329 = vmatpush.bf16.msra.mxu0 %v258
  %330 = vmatmul.bf16.gmra.mxu0 %v114
  %v331 = vpop.f32.mrf.mxu0
  %v332 = vadd.f32 %v88, %v331
  %v333 = vpop.f32.mrf.mxu0
  %v334 = vadd.f32 %v88, %v333
  %335 = vmatmul.bf16.gmra.mxu0 %v118
  %v336 = vpop.f32.mrf.mxu0
  %v337 = vadd.f32 %v88, %v336
  %v338 = vpop.f32.mrf.mxu0
  %v339 = vadd.f32 %v88, %v338
  %340 = vdwg.mxu0
  %341 = vmatpush.bf16.msra.mxu0 %v273
  %342 = vmatpush.bf16.msra.mxu0 %v272
  %343 = vmatpush.bf16.msra.mxu0 %v271
  %344 = vmatpush.bf16.msra.mxu0 %v270
  %345 = vmatpush.bf16.msra.mxu0 %v269
  %346 = vmatpush.bf16.msra.mxu0 %v268
  %347 = vmatpush.bf16.msra.mxu0 %v267
  %348 = vmatpush.bf16.msra.mxu0 %v266
  %349 = vmatmul.bf16.gmra.mxu0 %v115
  %v350 = vpop.f32.mrf.mxu0
  %v351 = vadd.f32 %v332, %v350
  %v352 = vpop.f32.mrf.mxu0
  %v353 = vadd.f32 %v334, %v352
  %354 = vmatmul.bf16.gmra.mxu0 %v119
  %v355 = vpop.f32.mrf.mxu0
  %v356 = vadd.f32 %v337, %v355
  %v357 = vpop.f32.mrf.mxu0
  %v358 = vadd.f32 %v339, %v357
  %359 = vdwg.mxu0
  %360 = vmatpush.bf16.msra.mxu0 %v281
  %361 = vmatpush.bf16.msra.mxu0 %v280
  %362 = vmatpush.bf16.msra.mxu0 %v279
  %363 = vmatpush.bf16.msra.mxu0 %v278
  %364 = vmatpush.bf16.msra.mxu0 %v277
  %365 = vmatpush.bf16.msra.mxu0 %v276
  %366 = vmatpush.bf16.msra.mxu0 %v275
  %367 = vmatpush.bf16.msra.mxu0 %v274
  %368 = vmatmul.bf16.gmra.mxu0 %v116
  %v369 = vpop.f32.mrf.mxu0
  %v370 = vadd.f32 %v351, %v369
  %v371 = vpop.f32.mrf.mxu0
  %v372 = vadd.f32 %v353, %v371
  %373 = vmatmul.bf16.gmra.mxu0 %v120
  %v374 = vpop.f32.mrf.mxu0
  %v375 = vadd.f32 %v356, %v374
  %v376 = vpop.f32.mrf.mxu0
  %v377 = vadd.f32 %v358, %v376
  %378 = vdwg.mxu0
  %379 = vmatpush.bf16.msra.mxu0 %v289
  %380 = vmatpush.bf16.msra.mxu0 %v288
  %381 = vmatpush.bf16.msra.mxu0 %v287
  %382 = vmatpush.bf16.msra.mxu0 %v286
  %383 = vmatpush.bf16.msra.mxu0 %v285
  %384 = vmatpush.bf16.msra.mxu0 %v284
  %385 = vmatpush.bf16.msra.mxu0 %v283
  %386 = vmatpush.bf16.msra.mxu0 %v282
  %387 = vmatmul.bf16.gmra.mxu0 %v117
  %v388 = vpop.f32.mrf.mxu0
  %v389 = vadd.f32 %v370, %v388
  %v390 = vpop.f32.mrf.mxu0
  %v391 = vadd.f32 %v372, %v390
  %392 = vmatmul.bf16.gmra.mxu0 %v121
  %v393 = vpop.f32.mrf.mxu0
  %v394 = vadd.f32 %v375, %v393
  %v395 = vpop.f32.mrf.mxu0
  %v396 = vadd.f32 %v377, %v395
  %397 = vdwg.mxu0
  %v398 = vmax.f32 %v389, 0.0
  %v399 = vmax.f32 %v391, 0.0
  %v400 = vmax.f32 %v394, 0.0
  %v401 = vmax.f32 %v396, 0.0
  %v402 = vpack.c.bf16 %v398, %v398
  %v403 = vpack.c.bf16 %v399, %v399
  %v404 = vpack.c.bf16 %v400, %v400
  %v405 = vpack.c.bf16 %v401, %v401
  %vm406 = vcmask 519168
  %407 = vst.msk [vmem:[%s3] sm:$0xf] %vm406, %v402
  %408 = vst.msk [vmem:[%s3 + $0x4] sm:$0xf] %vm406, %v403
  %409 = vst.msk [vmem:[%s3 + $0x8] sm:$0xf] %vm406, %v404
  %410 = vst.msk [vmem:[%s3 + $0xc] sm:$0xf] %vm406, %v405
  // Predicated region
  $region14: #{dqn_forward.5} parent=0 // pred_check
    _
  $region15: #{dqn_forward.5} parent=0 // pred_check_branch
    %412 = sbr.rel (0) target = $region17
  $region16: #{dqn_forward.5} parent=0 // pred_region
    _
  $region17: #{dqn_forward.5} parent=0 // pred_fallthru
    _
  // Predicated region
  $region18: #{dqn_forward.5} parent=0 // pred_check
    _
  $region19: #{dqn_forward.5} parent=0 // pred_check_branch
    %414 = sbr.rel (0) target = $region21
  $region20: #{dqn_forward.5} parent=0 // pred_region
    _
  $region21: #{dqn_forward.5} parent=0 // pred_fallthru
    _

// kernel: dqn_forward.6
$region0: #{dqn_forward.6}
  #allocation0 [shape = 'u32[]', space=smem, size = 0x4, offset = 0x4, fixed_abs, tag = 'smem constant byte address 0x4 - core index']
  #allocation1 [shape = 'u32[72,128]{1,0:T(1,128)}', space=vmem, size = 0x9000, scoped, tag = 'internal scratch']
  %s0 = inlined_call_operand.vmem [shape: bf16[16,576], index: 0, kind: input, shape index: {}]
  %s1 = inlined_call_operand.vmem [shape: bf16[576,64], index: 1, kind: input, shape index: {}]
  %s2 = inlined_call_operand.vmem [shape: f32[1,64], index: 2, kind: input, shape index: {}]
  %s3 = inlined_call_operand.vmem [shape: bf16[16,64], index: 3, kind: output, shape index: {}]
  %s4 = sld [smem:[#allocation0]]
  $region22: #{dqn_forward.6} parent=0
    _
  %s6 = ssub.s32 1, %s4
  %s7 = scalar_select 0, %s6, %s4
  // Predicated region
  $region2: #{dqn_forward.6} parent=0 // pred_check
    _
  $region3: #{dqn_forward.6} parent=0 // pred_check_branch
    %9 = sbr.rel (0) target = $region5
  $region4: #{dqn_forward.6} parent=0 // pred_region
    _
  $region5: #{dqn_forward.6} parent=0 // pred_fallthru
    _
  // Predicated region
  $region6: #{dqn_forward.6} parent=0 // pred_check
    _
  $region7: #{dqn_forward.6} parent=0 // pred_check_branch
    %11 = sbr.rel (0) target = $region9
  $region8: #{dqn_forward.6} parent=0 // pred_region
    _
  $region9: #{dqn_forward.6} parent=0 // pred_fallthru
    _
  // Predicated region
  $region10: #{dqn_forward.6} parent=0 // pred_check
    _
  $region11: #{dqn_forward.6} parent=0 // pred_check_branch
    %13 = sbr.rel (0) target = $region13
  $region12: #{dqn_forward.6} parent=0 // pred_region
    _
  $region13: #{dqn_forward.6} parent=0 // pred_fallthru
    _
  %v15 = vld [vmem:[%s0] sm:$0xff]
  %v16 = vld [vmem:[%s0 + $0x8] sm:$0xff]
  %v17 = vld [vmem:[%s0 + $0x10] sm:$0xf]
  %v18 = vld [vmem:[%s0 + $0x14] sm:$0xff]
  %v19 = vld [vmem:[%s0 + $0x1c] sm:$0xff]
  %v20 = vld [vmem:[%s0 + $0x24] sm:$0xf]
  %v21 = vld [vmem:[%s1] sm:$0xf]
  %v22 = vld [vmem:[%s1 + $0x4] sm:$0xf]
  %v23 = vld [vmem:[%s1 + $0x8] sm:$0xf]
  %v24 = vld [vmem:[%s1 + $0xc] sm:$0xf]
  %v25 = vld [vmem:[%s1 + $0x10] sm:$0xf]
  %v26 = vld [vmem:[%s1 + $0x14] sm:$0xf]
  %v27 = vld [vmem:[%s1 + $0x18] sm:$0xf]
  %v28 = vld [vmem:[%s1 + $0x1c] sm:$0xf]
  %v29 = vld [vmem:[%s1 + $0x20] sm:$0xf]
  %v30 = vld [vmem:[%s1 + $0x24] sm:$0xf]
  %v31 = vld [vmem:[%s1 + $0x28] sm:$0xf]
  %v32 = vld [vmem:[%s1 + $0x2c] sm:$0xf]
  %v33 = vld [vmem:[%s1 + $0x30] sm:$0xf]
  %v34 = vld [vmem:[%s1 + $0x34] sm:$0xf]
  %v35 = vld [vmem:[%s1 + $0x38] sm:$0xf]
  %v36 = vld [vmem:[%s1 + $0x3c] sm:$0xf]
  %v37 = vld [vmem:[%s1 + $0x40] sm:$0xf]
  %v38 = vld [vmem:[%s1 + $0x44] sm:$0xf]
  %v39 = vld [vmem:[%s1 + $0x48] sm:$0xf]
  %v40 = vld [vmem:[%s1 + $0x4c] sm:$0xf]
  %v41 = vld [vmem:[%s1 + $0x50] sm:$0xf]
  %v42 = vld [vmem:[%s1 + $0x54] sm:$0xf]
  %v43 = vld [vmem:[%s1 + $0x58] sm:$0xf]
  %v44 = vld [vmem:[%s1 + $0x5c] sm:$0xf]
  %v45 = vld [vmem:[%s1 + $0x60] sm:$0xf]
  %v46 = vld [vmem:[%s1 + $0x64] sm:$0xf]
  %v47 = vld [vmem:[%s1 + $0x68] sm:$0xf]
  %v48 = vld [vmem:[%s1 + $0x6c] sm:$0xf]
  %v49 = vld [vmem:[%s1 + $0x70] sm:$0xf]
  %v50 = vld [vmem:[%s1 + $0x74] sm:$0xf]
  %v51 = vld [vmem:[%s1 + $0x78] sm:$0xf]
  %v52 = vld [vmem:[%s1 + $0x7c] sm:$0xf]
  %v53 = vld [vmem:[%s1 + $0x80] sm:$0xf]
  %v54 = vld [vmem:[%s1 + $0x84] sm:$0xf]
  %v55 = vld [vmem:[%s1 + $0x88] sm:$0xf]
  %v56 = vld [vmem:[%s1 + $0x8c] sm:$0xf]
  %v57 = vld [vmem:[%s1 + $0x90] sm:$0xf]
  %v58 = vld [vmem:[%s1 + $0x94] sm:$0xf]
  %v59 = vld [vmem:[%s1 + $0x98] sm:$0xf]
  %v60 = vld [vmem:[%s1 + $0x9c] sm:$0xf]
  %v61 = vld [vmem:[%s1 + $0xa0] sm:$0xf]
  %v62 = vld [vmem:[%s1 + $0xa4] sm:$0xf]
  %v63 = vld [vmem:[%s1 + $0xa8] sm:$0xf]
  %v64 = vld [vmem:[%s1 + $0xac] sm:$0xf]
  %v65 = vld [vmem:[%s1 + $0xb0] sm:$0xf]
  %v66 = vld [vmem:[%s1 + $0xb4] sm:$0xf]
  %v67 = vld [vmem:[%s1 + $0xb8] sm:$0xf]
  %v68 = vld [vmem:[%s1 + $0xbc] sm:$0xf]
  %v69 = vld [vmem:[%s1 + $0xc0] sm:$0xf]
  %v70 = vld [vmem:[%s1 + $0xc4] sm:$0xf]
  %v71 = vld [vmem:[%s1 + $0xc8] sm:$0xf]
  %v72 = vld [vmem:[%s1 + $0xcc] sm:$0xf]
  %v73 = vld [vmem:[%s1 + $0xd0] sm:$0xf]
  %v74 = vld [vmem:[%s1 + $0xd4] sm:$0xf]
  %v75 = vld [vmem:[%s1 + $0xd8] sm:$0xf]
  %v76 = vld [vmem:[%s1 + $0xdc] sm:$0xf]
  %v77 = vld [vmem:[%s1 + $0xe0] sm:$0xf]
  %v78 = vld [vmem:[%s1 + $0xe4] sm:$0xf]
  %v79 = vld [vmem:[%s1 + $0xe8] sm:$0xf]
  %v80 = vld [vmem:[%s1 + $0xec] sm:$0xf]
  %v81 = vld [vmem:[%s1 + $0xf0] sm:$0xf]
  %v82 = vld [vmem:[%s1 + $0xf4] sm:$0xf]
  %v83 = vld [vmem:[%s1 + $0xf8] sm:$0xf]
  %v84 = vld [vmem:[%s1 + $0xfc] sm:$0xf]
  %v85 = vld [vmem:[%s1 + $0x100] sm:$0xf]
  %v86 = vld [vmem:[%s1 + $0x104] sm:$0xf]
  %v87 = vld [vmem:[%s1 + $0x108] sm:$0xf]
  %v88 = vld [vmem:[%s1 + $0x10c] sm:$0xf]
  %v89 = vld [vmem:[%s1 + $0x110] sm:$0xf]
  %v90 = vld [vmem:[%s1 + $0x114] sm:$0xf]
  %v91 = vld [vmem:[%s1 + $0x118] sm:$0xf]
  %v92 = vld [vmem:[%s1 + $0x11c] sm:$0xf]
  %v93 = vld [vmem:[%s2] sm:$0x1]
  %v95 = vperm.slane %v93, 0
  %v103 = vunpack.c.l.b16 %v15
  %v104 = vunpack.c.h.b16 %v15
  %v105 = vunpack.c.l.b16 %v16
  %v106 = vunpack.c.h.b16 %v16
  %v107 = vunpack.c.l.b16 %v17
  %v108 = vunpack.c.l.b16 %v18
  %v109 = vunpack.c.h.b16 %v18
  %v110 = vunpack.c.l.b16 %v19
  %v111 = vunpack.c.h.b16 %v19
  %v112 = vunpack.c.l.b16 %v20
  %v113 = vpack.c.b16 %v108, %v103
  %v114 = vpack.c.b16 %v109, %v104
  %v115 = vpack.c.b16 %v110, %v105
  %v116 = vpack.c.b16 %v111, %v106
  %v117 = vpack.c.b16 %v112, %v107
  %v194 = vunpack.c.l.b16 %v21
  %v195 = vunpack.c.l.b16 %v22
  %v196 = vunpack.c.l.b16 %v23
  %v197 = vunpack.c.l.b16 %v24
  %v198 = vunpack.c.l.b16 %v25
  %v199 = vunpack.c.l.b16 %v26
  %v200 = vunpack.c.l.b16 %v27
  %v201 = vunpack.c.l.b16 %v28
  %v202 = vunpack.c.l.b16 %v29
  %v203 = vunpack.c.l.b16 %v30
  %v204 = vunpack.c.l.b16 %v31
  %v205 = vunpack.c.l.b16 %v32
  %v206 = vunpack.c.l.b16 %v33
  %v207 = vunpack.c.l.b16 %v34
  %v208 = vunpack.c.l.b16 %v35
  %v209 = vunpack.c.l.b16 %v36
  %v210 = vunpack.c.l.b16 %v37
  %v211 = vunpack.c.l.b16 %v38
  %v212 = vunpack.c.l.b16 %v39
  %v213 = vunpack.c.l.b16 %v40
  %v214 = vunpack.c.l.b16 %v41
  %v215 = vunpack.c.l.b16 %v42
  %v216 = vunpack.c.l.b16 %v43
  %v217 = vunpack.c.l.b16 %v44
  %v218 = vunpack.c.l.b16 %v45
  %v219 = vunpack.c.l.b16 %v46
  %v220 = vunpack.c.l.b16 %v47
  %v221 = vunpack.c.l.b16 %v48
  %v222 = vunpack.c.l.b16 %v49
  %v223 = vunpack.c.l.b16 %v50
  %v224 = vunpack.c.l.b16 %v51
  %v225 = vunpack.c.l.b16 %v52
  %v226 = vunpack.c.l.b16 %v53
  %v227 = vunpack.c.l.b16 %v54
  %v228 = vunpack.c.l.b16 %v55
  %v229 = vunpack.c.l.b16 %v56
  %v230 = vunpack.c.l.b16 %v57
  %v231 = vunpack.c.l.b16 %v58
  %v232 = vunpack.c.l.b16 %v59
  %v233 = vunpack.c.l.b16 %v60
  %v234 = vunpack.c.l.b16 %v61
  %v235 = vunpack.c.l.b16 %v62
  %v236 = vunpack.c.l.b16 %v63
  %v237 = vunpack.c.l.b16 %v64
  %v238 = vunpack.c.l.b16 %v65
  %v239 = vunpack.c.l.b16 %v66
  %v240 = vunpack.c.l.b16 %v67
  %v241 = vunpack.c.l.b16 %v68
  %v242 = vunpack.c.l.b16 %v69
  %v243 = vunpack.c.l.b16 %v70
  %v244 = vunpack.c.l.b16 %v71
  %v245 = vunpack.c.l.b16 %v72
  %v246 = vunpack.c.l.b16 %v73
  %v247 = vunpack.c.l.b16 %v74
  %v248 = vunpack.c.l.b16 %v75
  %v249 = vunpack.c.l.b16 %v76
  %v250 = vunpack.c.l.b16 %v77
  %v251 = vunpack.c.l.b16 %v78
  %v252 = vunpack.c.l.b16 %v79
  %v253 = vunpack.c.l.b16 %v80
  %v254 = vunpack.c.l.b16 %v81
  %v255 = vunpack.c.l.b16 %v82
  %v256 = vunpack.c.l.b16 %v83
  %v257 = vunpack.c.l.b16 %v84
  %v258 = vunpack.c.l.b16 %v85
  %v259 = vunpack.c.l.b16 %v86
  %v260 = vunpack.c.l.b16 %v87
  %v261 = vunpack.c.l.b16 %v88
  %v262 = vunpack.c.l.b16 %v89
  %v263 = vunpack.c.l.b16 %v90
  %v264 = vunpack.c.l.b16 %v91
  %v265 = vunpack.c.l.b16 %v92
  %v266 = vpack.c.b16 %v195, %v194
  %v267 = vpack.c.b16 %v197, %v196
  %v268 = vpack.c.b16 %v199, %v198
  %v269 = vpack.c.b16 %v201, %v200
  %v270 = vpack.c.b16 %v203, %v202
  %v271 = vpack.c.b16 %v205, %v204
  %v272 = vpack.c.b16 %v207, %v206
  %v273 = vpack.c.b16 %v209, %v208
  %v274 = vpack.c.b16 %v211, %v210
  %v275 = vpack.c.b16 %v213, %v212
  %v276 = vpack.c.b16 %v215, %v214
  %v277 = vpack.c.b16 %v217, %v216
  %v278 = vpack.c.b16 %v219, %v218
  %v279 = vpack.c.b16 %v221, %v220
  %v280 = vpack.c.b16 %v223, %v222
  %v281 = vpack.c.b16 %v225, %v224
  %v282 = vpack.c.b16 %v227, %v226
  %v283 = vpack.c.b16 %v229, %v228
  %v284 = vpack.c.b16 %v231, %v230
  %v285 = vpack.c.b16 %v233, %v232
  %v286 = vpack.c.b16 %v235, %v234
  %v287 = vpack.c.b16 %v237, %v236
  %v288 = vpack.c.b16 %v239, %v238
  %v289 = vpack.c.b16 %v241, %v240
  %v290 = vpack.c.b16 %v243, %v242
  %v291 = vpack.c.b16 %v245, %v244
  %v292 = vpack.c.b16 %v247, %v246
  %v293 = vpack.c.b16 %v249, %v248
  %v294 = vpack.c.b16 %v251, %v250
  %v295 = vpack.c.b16 %v253, %v252
  %v296 = vpack.c.b16 %v255, %v254
  %v297 = vpack.c.b16 %v257, %v256
  %v298 = vpack.c.b16 %v259, %v258
  %v299 = vpack.c.b16 %v261, %v260
  %v300 = vpack.c.b16 %v263, %v262
  %v301 = vpack.c.b16 %v265, %v264
  %vm338 = vcmask 523264
  %v340 = vsel %vm338, %v117, 0
  %342 = vmatpush.bf16.msra.mxu0 %v273
  %343 = vmatpush.bf16.msra.mxu0 %v272
  %344 = vmatpush.bf16.msra.mxu0 %v271
  %345 = vmatpush.bf16.msra.mxu0 %v270
  %346 = vmatpush.bf16.msra.mxu0 %v269
  %347 = vmatpush.bf16.msra.mxu0 %v268
  %348 = vmatpush.bf16.msra.mxu0 %v267
  %349 = vmatpush.bf16.msra.mxu0 %v266
  %350 = vmatmul.bf16.gmra.mxu0 %v113
  %v351 = vpop.f32.mrf.mxu0
  %v352 = vadd.f32 %v95, %v351
  %v353 = vpop.f32.mrf.mxu0
  %v354 = vadd.f32 %v95, %v353
  %355 = vdwg.mxu0
  %356 = vmatpush.bf16.msra.mxu0 %v281
  %357 = vmatpush.bf16.msra.mxu0 %v280
  %358 = vmatpush.bf16.msra.mxu0 %v279
  %359 = vmatpush.bf16.msra.mxu0 %v278
  %360 = vmatpush.bf16.msra.mxu0 %v277
  %361 = vmatpush.bf16.msra.mxu0 %v276
  %362 = vmatpush.bf16.msra.mxu0 %v275
  %363 = vmatpush.bf16.msra.mxu0 %v274
  %364 = vmatmul.bf16.gmra.mxu0 %v114
  %v365 = vpop.f32.mrf.mxu0
  %v366 = vadd.f32 %v352, %v365
  %v367 = vpop.f32.mrf.mxu0
  %v368 = vadd.f32 %v354, %v367
  %369 = vdwg.mxu0
  %370 = vmatpush.bf16.msra.mxu0 %v289
  %371 = vmatpush.bf16.msra.mxu0 %v288
  %372 = vmatpush.bf16.msra.mxu0 %v287
  %373 = vmatpush.bf16.msra.mxu0 %v286
  %374 = vmatpush.bf16.msra.mxu0 %v285
  %375 = vmatpush.bf16.msra.mxu0 %v284
  %376 = vmatpush.bf16.msra.mxu0 %v283
  %377 = vmatpush.bf16.msra.mxu0 %v282
  %378 = vmatmul.bf16.gmra.mxu0 %v115
  %v379 = vpop.f32.mrf.mxu0
  %v380 = vadd.f32 %v366, %v379
  %v381 = vpop.f32.mrf.mxu0
  %v382 = vadd.f32 %v368, %v381
  %383 = vdwg.mxu0
  %384 = vmatpush.bf16.msra.mxu0 %v297
  %385 = vmatpush.bf16.msra.mxu0 %v296
  %386 = vmatpush.bf16.msra.mxu0 %v295
  %387 = vmatpush.bf16.msra.mxu0 %v294
  %388 = vmatpush.bf16.msra.mxu0 %v293
  %389 = vmatpush.bf16.msra.mxu0 %v292
  %390 = vmatpush.bf16.msra.mxu0 %v291
  %391 = vmatpush.bf16.msra.mxu0 %v290
  %392 = vmatmul.bf16.gmra.mxu0 %v116
  %v393 = vpop.f32.mrf.mxu0
  %v394 = vadd.f32 %v380, %v393
  %v395 = vpop.f32.mrf.mxu0
  %v396 = vadd.f32 %v382, %v395
  %397 = vdwg.mxu0
  %398 = vmatpush.bf16.msra.mxu0 0
  %399 = vmatpush.bf16.msra.mxu0 0
  %400 = vmatpush.bf16.msra.mxu0 0
  %401 = vmatpush.bf16.msra.mxu0 0
  %402 = vmatpush.bf16.msra.mxu0 %v301
  %403 = vmatpush.bf16.msra.mxu0 %v300
  %404 = vmatpush.bf16.msra.mxu0 %v299
  %405 = vmatpush.bf16.msra.mxu0 %v298
  %406 = vmatmul.bf16.gmra.mxu0 %v340
  %v407 = vpop.f32.mrf.mxu0
  %v408 = vadd.f32 %v394, %v407
  %v409 = vpop.f32.mrf.mxu0
  %v410 = vadd.f32 %v396, %v409
  %411 = vdwg.mxu0
  %v412 = vmax.f32 %v408, 0.0
  %v413 = vmax.f32 %v410, 0.0
  %v414 = vpack.c.bf16 %v412, %v412
  %v415 = vpack.c.bf16 %v413, %v413
  %vm416 = vcmask 519168
  %417 = vst.msk [vmem:[%s3] sm:$0xf] %vm416, %v414
  %418 = vst.msk [vmem:[%s3 + $0x4] sm:$0xf] %vm416, %v415
  // Predicated region
  $region14: #{dqn_forward.6} parent=0 // pred_check
    _
  $region15: #{dqn_forward.6} parent=0 // pred_check_branch
    %420 = sbr.rel (0) target = $region17
  $region16: #{dqn_forward.6} parent=0 // pred_region
    _
  $region17: #{dqn_forward.6} parent=0 // pred_fallthru
    _
  // Predicated region
  $region18: #{dqn_forward.6} parent=0 // pred_check
    _
  $region19: #{dqn_forward.6} parent=0 // pred_check_branch
    %422 = sbr.rel (0) target = $region21
  $region20: #{dqn_forward.6} parent=0 // pred_region
    _
  $region21: #{dqn_forward.6} parent=0 // pred_fallthru
    _

// kernel: dqn_forward.7
$region0: #{dqn_forward.7}
  #allocation0 [shape = 'u32[]', space=smem, size = 0x4, offset = 0x4, fixed_abs, tag = 'smem constant byte address 0x4 - core index']
  #allocation1 [shape = 'u32[72,128]{1,0:T(1,128)}', space=vmem, size = 0x9000, scoped, tag = 'internal scratch']
  %s0 = inlined_call_operand.vmem [shape: bf16[16,64], index: 0, kind: input, shape index: {}]
  %s1 = inlined_call_operand.vmem [shape: bf16[64,512], index: 1, kind: input, shape index: {}]
  %s2 = inlined_call_operand.vmem [shape: f32[1,512], index: 2, kind: input, shape index: {}]
  %s3 = inlined_call_operand.vmem [shape: bf16[512,6], index: 3, kind: input, shape index: {}]
  %s4 = inlined_call_operand.vmem [shape: f32[1,6], index: 4, kind: input, shape index: {}]
  %s5 = inlined_call_operand.vmem [shape: f32[16,6], index: 5, kind: output, shape index: {}]
  %s6 = sld [smem:[#allocation0]]
  $region30: #{dqn_forward.7} parent=0
    _
  %s8 = ssub.s32 1, %s6
  %s9 = scalar_select 0, %s8, %s6
  // Predicated region
  $region2: #{dqn_forward.7} parent=0 // pred_check
    _
  $region3: #{dqn_forward.7} parent=0 // pred_check_branch
    %11 = sbr.rel (0) target = $region5
  $region4: #{dqn_forward.7} parent=0 // pred_region
    _
  $region5: #{dqn_forward.7} parent=0 // pred_fallthru
    _
  // Predicated region
  $region6: #{dqn_forward.7} parent=0 // pred_check
    _
  $region7: #{dqn_forward.7} parent=0 // pred_check_branch
    %13 = sbr.rel (0) target = $region9
  $region8: #{dqn_forward.7} parent=0 // pred_region
    _
  $region9: #{dqn_forward.7} parent=0 // pred_fallthru
    _
  // Predicated region
  $region10: #{dqn_forward.7} parent=0 // pred_check
    _
  $region11: #{dqn_forward.7} parent=0 // pred_check_branch
    %15 = sbr.rel (0) target = $region13
  $region12: #{dqn_forward.7} parent=0 // pred_region
    _
  $region13: #{dqn_forward.7} parent=0 // pred_fallthru
    _
  // Predicated region
  $region14: #{dqn_forward.7} parent=0 // pred_check
    _
  $region15: #{dqn_forward.7} parent=0 // pred_check_branch
    %17 = sbr.rel (0) target = $region17
  $region16: #{dqn_forward.7} parent=0 // pred_region
    _
  $region17: #{dqn_forward.7} parent=0 // pred_fallthru
    _
  // Predicated region
  $region18: #{dqn_forward.7} parent=0 // pred_check
    _
  $region19: #{dqn_forward.7} parent=0 // pred_check_branch
    %19 = sbr.rel (0) target = $region21
  $region20: #{dqn_forward.7} parent=0 // pred_region
    _
  $region21: #{dqn_forward.7} parent=0 // pred_fallthru
    _
  %v21 = vld [vmem:[%s0] sm:$0xf]
  %v22 = vld [vmem:[%s0 + $0x4] sm:$0xf]
  %v23 = vld [vmem:[%s1] sm:$0xff]
  %v24 = vld [vmem:[%s1 + $0x8] sm:$0xff]
  %v25 = vld [vmem:[%s1 + $0x10] sm:$0xff]
  %v26 = vld [vmem:[%s1 + $0x18] sm:$0xff]
  %v27 = vld [vmem:[%s1 + $0x20] sm:$0xff]
  %v28 = vld [vmem:[%s1 + $0x28] sm:$0xff]
  %v29 = vld [vmem:[%s1 + $0x30] sm:$0xff]
  %v30 = vld [vmem:[%s1 + $0x38] sm:$0xff]
  %v31 = vld [vmem:[%s1 + $0x40] sm:$0xff]
  %v32 = vld [vmem:[%s1 + $0x48] sm:$0xff]
  %v33 = vld [vmem:[%s1 + $0x50] sm:$0xff]
  %v34 = vld [vmem:[%s1 + $0x58] sm:$0xff]
  %v35 = vld [vmem:[%s1 + $0x60] sm:$0xff]
  %v36 = vld [vmem:[%s1 + $0x68] sm:$0xff]
  %v37 = vld [vmem:[%s1 + $0x70] sm:$0xff]
  %v38 = vld [vmem:[%s1 + $0x78] sm:$0xff]
  %v39 = vld [vmem:[%s2] sm:$0xf]
  %v41 = vperm.slane %v39, 0
  %v42 = vperm.slane %v39, 1
  %v43 = vperm.slane %v39, 2
  %v44 = vperm.slane %v39, 3
  %v51 = vunpack.c.l.b16 %v21
  %v52 = vunpack.c.l.b16 %v22
  %v53 = vpack.c.b16 %v52, %v51
  %v70 = vunpack.c.l.b16 %v23
  %v71 = vunpack.c.h.b16 %v23
  %v72 = vunpack.c.l.b16 %v24
  %v73 = vunpack.c.h.b16 %v24
  %v74 = vunpack.c.l.b16 %v25
  %v75 = vunpack.c.h.b16 %v25
  %v76 = vunpack.c.l.b16 %v26
  %v77 = vunpack.c.h.b16 %v26
  %v78 = vunpack.c.l.b16 %v27
  %v79 = vunpack.c.h.b16 %v27
  %v80 = vunpack.c.l.b16 %v28
  %v81 = vunpack.c.h.b16 %v28
  %v82 = vunpack.c.l.b16 %v29
  %v83 = vunpack.c.h.b16 %v29
  %v84 = vunpack.c.l.b16 %v30
  %v85 = vunpack.c.h.b16 %v30
  %v86 = vunpack.c.l.b16 %v31
  %v87 = vunpack.c.h.b16 %v31
  %v88 = vunpack.c.l.b16 %v32
  %v89 = vunpack.c.h.b16 %v32
  %v90 = vunpack.c.l.b16 %v33
  %v91 = vunpack.c.h.b16 %v33
  %v92 = vunpack.c.l.b16 %v34
  %v93 = vunpack.c.h.b16 %v34
  %v94 = vunpack.c.l.b16 %v35
  %v95 = vunpack.c.h.b16 %v35
  %v96 = vunpack.c.l.b16 %v36
  %v97 = vunpack.c.h.b16 %v36
  %v98 = vunpack.c.l.b16 %v37
  %v99 = vunpack.c.h.b16 %v37
  %v100 = vunpack.c.l.b16 %v38
  %v101 = vunpack.c.h.b16 %v38
  %v102 = vpack.c.b16 %v74, %v70
  %v103 = vpack.c.b16 %v75, %v71
  %v104 = vpack.c.b16 %v76, %v72
  %v105 = vpack.c.b16 %v77, %v73
  %v106 = vpack.c.b16 %v82, %v78
  %v107 = vpack.c.b16 %v83, %v79
  %v108 = vpack.c.b16 %v84, %v80
  %v109 = vpack.c.b16 %v85, %v81
  %v110 = vpack.c.b16 %v90, %v86
  %v111 = vpack.c.b16 %v91, %v87
  %v112 = vpack.c.b16 %v92, %v88
  %v113 = vpack.c.b16 %v93, %v89
  %v114 = vpack.c.b16 %v98, %v94
  %v115 = vpack.c.b16 %v99, %v95
  %v116 = vpack.c.b16 %v100, %v96
  %v117 = vpack.c.b16 %v101, %v97
  %vm134 = vcmask 523264
  %v136 = vsel %vm134, %v53, 0
  %138 = vmatpush.bf16.msra.mxu0 0
  %139 = vmatpush.bf16.msra.mxu0 0
  %140 = vmatpush.bf16.msra.mxu0 0
  %141 = vmatpush.bf16.msra.mxu0 0
  %142 = vmatpush.bf16.msra.mxu0 %v114
  %143 = vmatpush.bf16.msra.mxu0 %v110
  %144 = vmatpush.bf16.msra.mxu0 %v106
  %145 = vmatpush.bf16.msra.mxu0 %v102
  %146 = vmatmul.bf16.gmra.mxu0 %v136
  %v147 = vpop.f32.mrf.mxu0
  %v148 = vadd.f32 %v41, %v147
  %v149 = vpop.f32.mrf.mxu0
  %v150 = vadd.f32 %v41, %v149
  %151 = vdwg.mxu0
  %152 = vmatpush.bf16.msra.mxu0 0
  %153 = vmatpush.bf16.msra.mxu0 0
  %154 = vmatpush.bf16.msra.mxu0 0
  %155 = vmatpush.bf16.msra.mxu0 0
  %156 = vmatpush.bf16.msra.mxu0 %v115
  %157 = vmatpush.bf16.msra.mxu0 %v111
  %158 = vmatpush.bf16.msra.mxu0 %v107
  %159 = vmatpush.bf16.msra.mxu0 %v103
  %160 = vmatmul.bf16.gmra.mxu0 %v136
  %v161 = vpop.f32.mrf.mxu0
  %v162 = vadd.f32 %v42, %v161
  %v163 = vpop.f32.mrf.mxu0
  %v164 = vadd.f32 %v42, %v163
  %165 = vdwg.mxu0
  %166 = vmatpush.bf16.msra.mxu0 0
  %167 = vmatpush.bf16.msra.mxu0 0
  %168 = vmatpush.bf16.msra.mxu0 0
  %169 = vmatpush.bf16.msra.mxu0 0
  %170 = vmatpush.bf16.msra.mxu0 %v116
  %171 = vmatpush.bf16.msra.mxu0 %v112
  %172 = vmatpush.bf16.msra.mxu0 %v108
  %173 = vmatpush.bf16.msra.mxu0 %v104
  %174 = vmatmul.bf16.gmra.mxu0 %v136
  %v175 = vpop.f32.mrf.mxu0
  %v176 = vadd.f32 %v43, %v175
  %v177 = vpop.f32.mrf.mxu0
  %v178 = vadd.f32 %v43, %v177
  %179 = vdwg.mxu0
  %180 = vmatpush.bf16.msra.mxu0 0
  %181 = vmatpush.bf16.msra.mxu0 0
  %182 = vmatpush.bf16.msra.mxu0 0
  %183 = vmatpush.bf16.msra.mxu0 0
  %184 = vmatpush.bf16.msra.mxu0 %v117
  %185 = vmatpush.bf16.msra.mxu0 %v113
  %186 = vmatpush.bf16.msra.mxu0 %v109
  %187 = vmatpush.bf16.msra.mxu0 %v105
  %188 = vmatmul.bf16.gmra.mxu0 %v136
  %v189 = vpop.f32.mrf.mxu0
  %v190 = vadd.f32 %v44, %v189
  %v191 = vpop.f32.mrf.mxu0
  %v192 = vadd.f32 %v44, %v191
  %193 = vdwg.mxu0
  %v194 = vmax.f32 %v148, 0.0
  %v195 = vmax.f32 %v162, 0.0
  %v196 = vmax.f32 %v176, 0.0
  %v197 = vmax.f32 %v190, 0.0
  %v198 = vmax.f32 %v150, 0.0
  %v199 = vmax.f32 %v164, 0.0
  %v200 = vmax.f32 %v178, 0.0
  %v201 = vmax.f32 %v192, 0.0
  %v202 = vpack.c.bf16 %v198, %v194
  %v203 = vpack.c.bf16 %v199, %v195
  %v204 = vpack.c.bf16 %v200, %v196
  %v205 = vpack.c.bf16 %v201, %v197
  %v206 = vld [vmem:[%s3] sm:$0xf]
  %v207 = vld [vmem:[%s3 + $0x4] sm:$0xf]
  %v208 = vld [vmem:[%s3 + $0x8] sm:$0xf]
  %v209 = vld [vmem:[%s3 + $0xc] sm:$0xf]
  %v210 = vld [vmem:[%s3 + $0x10] sm:$0xf]
  %v211 = vld [vmem:[%s3 + $0x14] sm:$0xf]
  %v212 = vld [vmem:[%s3 + $0x18] sm:$0xf]
  %v213 = vld [vmem:[%s3 + $0x1c] sm:$0xf]
  %v214 = vld [vmem:[%s3 + $0x20] sm:$0xf]
  %v215 = vld [vmem:[%s3 + $0x24] sm:$0xf]
  %v216 = vld [vmem:[%s3 + $0x28] sm:$0xf]
  %v217 = vld [vmem:[%s3 + $0x2c] sm:$0xf]
  %v218 = vld [vmem:[%s3 + $0x30] sm:$0xf]
  %v219 = vld [vmem:[%s3 + $0x34] sm:$0xf]
  %v220 = vld [vmem:[%s3 + $0x38] sm:$0xf]
  %v221 = vld [vmem:[%s3 + $0x3c] sm:$0xf]
  %v222 = vld [vmem:[%s3 + $0x40] sm:$0xf]
  %v223 = vld [vmem:[%s3 + $0x44] sm:$0xf]
  %v224 = vld [vmem:[%s3 + $0x48] sm:$0xf]
  %v225 = vld [vmem:[%s3 + $0x4c] sm:$0xf]
  %v226 = vld [vmem:[%s3 + $0x50] sm:$0xf]
  %v227 = vld [vmem:[%s3 + $0x54] sm:$0xf]
  %v228 = vld [vmem:[%s3 + $0x58] sm:$0xf]
  %v229 = vld [vmem:[%s3 + $0x5c] sm:$0xf]
  %v230 = vld [vmem:[%s3 + $0x60] sm:$0xf]
  %v231 = vld [vmem:[%s3 + $0x64] sm:$0xf]
  %v232 = vld [vmem:[%s3 + $0x68] sm:$0xf]
  %v233 = vld [vmem:[%s3 + $0x6c] sm:$0xf]
  %v234 = vld [vmem:[%s3 + $0x70] sm:$0xf]
  %v235 = vld [vmem:[%s3 + $0x74] sm:$0xf]
  %v236 = vld [vmem:[%s3 + $0x78] sm:$0xf]
  %v237 = vld [vmem:[%s3 + $0x7c] sm:$0xf]
  %v238 = vld [vmem:[%s3 + $0x80] sm:$0xf]
  %v239 = vld [vmem:[%s3 + $0x84] sm:$0xf]
  %v240 = vld [vmem:[%s3 + $0x88] sm:$0xf]
  %v241 = vld [vmem:[%s3 + $0x8c] sm:$0xf]
  %v242 = vld [vmem:[%s3 + $0x90] sm:$0xf]
  %v243 = vld [vmem:[%s3 + $0x94] sm:$0xf]
  %v244 = vld [vmem:[%s3 + $0x98] sm:$0xf]
  %v245 = vld [vmem:[%s3 + $0x9c] sm:$0xf]
  %v246 = vld [vmem:[%s3 + $0xa0] sm:$0xf]
  %v247 = vld [vmem:[%s3 + $0xa4] sm:$0xf]
  %v248 = vld [vmem:[%s3 + $0xa8] sm:$0xf]
  %v249 = vld [vmem:[%s3 + $0xac] sm:$0xf]
  %v250 = vld [vmem:[%s3 + $0xb0] sm:$0xf]
  %v251 = vld [vmem:[%s3 + $0xb4] sm:$0xf]
  %v252 = vld [vmem:[%s3 + $0xb8] sm:$0xf]
  %v253 = vld [vmem:[%s3 + $0xbc] sm:$0xf]
  %v254 = vld [vmem:[%s3 + $0xc0] sm:$0xf]
  %v255 = vld [vmem:[%s3 + $0xc4] sm:$0xf]
  %v256 = vld [vmem:[%s3 + $0xc8] sm:$0xf]
  %v257 = vld [vmem:[%s3 + $0xcc] sm:$0xf]
  %v258 = vld [vmem:[%s3 + $0xd0] sm:$0xf]
  %v259 = vld [vmem:[%s3 + $0xd4] sm:$0xf]
  %v260 = vld [vmem:[%s3 + $0xd8] sm:$0xf]
  %v261 = vld [vmem:[%s3 + $0xdc] sm:$0xf]
  %v262 = vld [vmem:[%s3 + $0xe0] sm:$0xf]
  %v263 = vld [vmem:[%s3 + $0xe4] sm:$0xf]
  %v264 = vld [vmem:[%s3 + $0xe8] sm:$0xf]
  %v265 = vld [vmem:[%s3 + $0xec] sm:$0xf]
  %v266 = vld [vmem:[%s3 + $0xf0] sm:$0xf]
  %v267 = vld [vmem:[%s3 + $0xf4] sm:$0xf]
  %v268 = vld [vmem:[%s3 + $0xf8] sm:$0xf]
  %v269 = vld [vmem:[%s3 + $0xfc] sm:$0xf]
  %v270 = vld [vmem:[%s4] sm:$0x1]
  %v272 = vperm.slane %v270, 0
  %v338 = vunpack.c.l.b16 %v206
  %v339 = vunpack.c.l.b16 %v207
  %v340 = vunpack.c.l.b16 %v208
  %v341 = vunpack.c.l.b16 %v209
  %v342 = vunpack.c.l.b16 %v210
  %v343 = vunpack.c.l.b16 %v211
  %v344 = vunpack.c.l.b16 %v212
  %v345 = vunpack.c.l.b16 %v213
  %v346 = vunpack.c.l.b16 %v214
  %v347 = vunpack.c.l.b16 %v215
  %v348 = vunpack.c.l.b16 %v216
  %v349 = vunpack.c.l.b16 %v217
  %v350 = vunpack.c.l.b16 %v218
  %v351 = vunpack.c.l.b16 %v219
  %v352 = vunpack.c.l.b16 %v220
  %v353 = vunpack.c.l.b16 %v221
  %v354 = vunpack.c.l.b16 %v222
  %v355 = vunpack.c.l.b16 %v223
  %v356 = vunpack.c.l.b16 %v224
  %v357 = vunpack.c.l.b16 %v225
  %v358 = vunpack.c.l.b16 %v226
  %v359 = vunpack.c.l.b16 %v227
  %v360 = vunpack.c.l.b16 %v228
  %v361 = vunpack.c.l.b16 %v229
  %v362 = vunpack.c.l.b16 %v230
  %v363 = vunpack.c.l.b16 %v231
  %v364 = vunpack.c.l.b16 %v232
  %v365 = vunpack.c.l.b16 %v233
  %v366 = vunpack.c.l.b16 %v234
  %v367 = vunpack.c.l.b16 %v235
  %v368 = vunpack.c.l.b16 %v236
  %v369 = vunpack.c.l.b16 %v237
  %v370 = vunpack.c.l.b16 %v238
  %v371 = vunpack.c.l.b16 %v239
  %v372 = vunpack.c.l.b16 %v240
  %v373 = vunpack.c.l.b16 %v241
  %v374 = vunpack.c.l.b16 %v242
  %v375 = vunpack.c.l.b16 %v243
  %v376 = vunpack.c.l.b16 %v244
  %v377 = vunpack.c.l.b16 %v245
  %v378 = vunpack.c.l.b16 %v246
  %v379 = vunpack.c.l.b16 %v247
  %v380 = vunpack.c.l.b16 %v248
  %v381 = vunpack.c.l.b16 %v249
  %v382 = vunpack.c.l.b16 %v250
  %v383 = vunpack.c.l.b16 %v251
  %v384 = vunpack.c.l.b16 %v252
  %v385 = vunpack.c.l.b16 %v253
  %v386 = vunpack.c.l.b16 %v254
  %v387 = vunpack.c.l.b16 %v255
  %v388 = vunpack.c.l.b16 %v256
  %v389 = vunpack.c.l.b16 %v257
  %v390 = vunpack.c.l.b16 %v258
  %v391 = vunpack.c.l.b16 %v259
  %v392 = vunpack.c.l.b16 %v260
  %v393 = vunpack.c.l.b16 %v261
  %v394 = vunpack.c.l.b16 %v262
  %v395 = vunpack.c.l.b16 %v263
  %v396 = vunpack.c.l.b16 %v264
  %v397 = vunpack.c.l.b16 %v265
  %v398 = vunpack.c.l.b16 %v266
  %v399 = vunpack.c.l.b16 %v267
  %v400 = vunpack.c.l.b16 %v268
  %v401 = vunpack.c.l.b16 %v269
  %v402 = vpack.c.b16 %v339, %v338
  %v403 = vpack.c.b16 %v341, %v340
  %v404 = vpack.c.b16 %v343, %v342
  %v405 = vpack.c.b16 %v345, %v344
  %v406 = vpack.c.b16 %v347, %v346
  %v407 = vpack.c.b16 %v349, %v348
  %v408 = vpack.c.b16 %v351, %v350
  %v409 = vpack.c.b16 %v353, %v352
  %v410 = vpack.c.b16 %v355, %v354
  %v411 = vpack.c.b16 %v357, %v356
  %v412 = vpack.c.b16 %v359, %v358
  %v413 = vpack.c.b16 %v361, %v360
  %v414 = vpack.c.b16 %v363, %v362
  %v415 = vpack.c.b16 %v365, %v364
  %v416 = vpack.c.b16 %v367, %v366
  %v417 = vpack.c.b16 %v369, %v368
  %v418 = vpack.c.b16 %v371, %v370
  %v419 = vpack.c.b16 %v373, %v372
  %v420 = vpack.c.b16 %v375, %v374
  %v421 = vpack.c.b16 %v377, %v376
  %v422 = vpack.c.b16 %v379, %v378
  %v423 = vpack.c.b16 %v381, %v380
  %v424 = vpack.c.b16 %v383, %v382
  %v425 = vpack.c.b16 %v385, %v384
  %v426 = vpack.c.b16 %v387, %v386
  %v427 = vpack.c.b16 %v389, %v388
  %v428 = vpack.c.b16 %v391, %v390
  %v429 = vpack.c.b16 %v393, %v392
  %v430 = vpack.c.b16 %v395, %v394
  %v431 = vpack.c.b16 %v397, %v396
  %v432 = vpack.c.b16 %v399, %v398
  %v433 = vpack.c.b16 %v401, %v400
  %466 = vmatpush.bf16.msra.mxu0 %v409
  %467 = vmatpush.bf16.msra.mxu0 %v408
  %468 = vmatpush.bf16.msra.mxu0 %v407
  %469 = vmatpush.bf16.msra.mxu0 %v406
  %470 = vmatpush.bf16.msra.mxu0 %v405
  %471 = vmatpush.bf16.msra.mxu0 %v404
  %472 = vmatpush.bf16.msra.mxu0 %v403
  %473 = vmatpush.bf16.msra.mxu0 %v402
  %474 = vmatmul.bf16.gmra.mxu0 %v202
  %v475 = vpop.f32.mrf.mxu0
  %v476 = vadd.f32 %v272, %v475
  %v477 = vpop.f32.mrf.mxu0
  %v478 = vadd.f32 %v272, %v477
  %479 = vdwg.mxu0
  %480 = vmatpush.bf16.msra.mxu0 %v417
  %481 = vmatpush.bf16.msra.mxu0 %v416
  %482 = vmatpush.bf16.msra.mxu0 %v415
  %483 = vmatpush.bf16.msra.mxu0 %v414
  %484 = vmatpush.bf16.msra.mxu0 %v413
  %485 = vmatpush.bf16.msra.mxu0 %v412
  %486 = vmatpush.bf16.msra.mxu0 %v411
  %487 = vmatpush.bf16.msra.mxu0 %v410
  %488 = vmatmul.bf16.gmra.mxu0 %v203
  %v489 = vpop.f32.mrf.mxu0
  %v490 = vadd.f32 %v476, %v489
  %v491 = vpop.f32.mrf.mxu0
  %v492 = vadd.f32 %v478, %v491
  %493 = vdwg.mxu0
  %494 = vmatpush.bf16.msra.mxu0 %v425
  %495 = vmatpush.bf16.msra.mxu0 %v424
  %496 = vmatpush.bf16.msra.mxu0 %v423
  %497 = vmatpush.bf16.msra.mxu0 %v422
  %498 = vmatpush.bf16.msra.mxu0 %v421
  %499 = vmatpush.bf16.msra.mxu0 %v420
  %500 = vmatpush.bf16.msra.mxu0 %v419
  %501 = vmatpush.bf16.msra.mxu0 %v418
  %502 = vmatmul.bf16.gmra.mxu0 %v204
  %v503 = vpop.f32.mrf.mxu0
  %v504 = vadd.f32 %v490, %v503
  %v505 = vpop.f32.mrf.mxu0
  %v506 = vadd.f32 %v492, %v505
  %507 = vdwg.mxu0
  %508 = vmatpush.bf16.msra.mxu0 %v433
  %509 = vmatpush.bf16.msra.mxu0 %v432
  %510 = vmatpush.bf16.msra.mxu0 %v431
  %511 = vmatpush.bf16.msra.mxu0 %v430
  %512 = vmatpush.bf16.msra.mxu0 %v429
  %513 = vmatpush.bf16.msra.mxu0 %v428
  %514 = vmatpush.bf16.msra.mxu0 %v427
  %515 = vmatpush.bf16.msra.mxu0 %v426
  %516 = vmatmul.bf16.gmra.mxu0 %v205
  %v517 = vpop.f32.mrf.mxu0
  %v518 = vadd.f32 %v504, %v517
  %v519 = vpop.f32.mrf.mxu0
  %v520 = vadd.f32 %v506, %v519
  %521 = vdwg.mxu0
  %vm522 = vcmask 48128
  %523 = vst.msk [vmem:[%s5] sm:$0xff] %vm522, %v518
  %524 = vst.msk [vmem:[%s5 + $0x8] sm:$0xff] %vm522, %v520
  // Predicated region
  $region22: #{dqn_forward.7} parent=0 // pred_check
    _
  $region23: #{dqn_forward.7} parent=0 // pred_check_branch
    %526 = sbr.rel (0) target = $region25
  $region24: #{dqn_forward.7} parent=0 // pred_region
    _
  $region25: #{dqn_forward.7} parent=0 // pred_fallthru
    _
  // Predicated region
  $region26: #{dqn_forward.7} parent=0 // pred_check
    _
  $region27: #{dqn_forward.7} parent=0 // pred_check_branch
    %528 = sbr.rel (0) target = $region29
  $region28: #{dqn_forward.7} parent=0 // pred_region
    _
  $region29: #{dqn_forward.7} parent=0 // pred_fallthru
    _

</llo_original>
